<compile_context>
chip_gen: v7x
topology: tpu7x:2x2x1
jax: 0.10.0
libtpu: 0.0.40
codegen_flags: <defaults>
</compile_context>

<pallas_src>
import math
from functools import partial

import jax
import jax.numpy as jnp
import numpy as np
from jax.experimental import pallas as pl
from jax.experimental.pallas import tpu as pltpu

D_MODEL = 32
N_HEAD = 4
D_HEAD = D_MODEL // N_HEAD
D_FF = 4 * D_MODEL
SEQ = 8
BATCH = 2
LN_EPS = 1e-5

_INV_SQRT2 = 1.0 / math.sqrt(2.0)


def _gelu_exact(x):
    # Exact (erf) GELU — matches PyTorch nn.GELU() default; erf lowers to the EUP.
    return 0.5 * x * (1.0 + jax.lax.erf(x * _INV_SQRT2))


def _layernorm(x, w, b):
    mu = jnp.mean(x, axis=-1, keepdims=True)
    var = jnp.mean((x - mu) ** 2, axis=-1, keepdims=True)
    return (x - mu) * jax.lax.rsqrt(var + LN_EPS) * w + b


def encoder_block_kernel(
    x_ref,        # (N, D)   N = B*S flattened tokens
    vec_ref,      # (6, D)   rows: ln1_w, ln1_b, ln2_w, ln2_b, b_o, b_proj
    wqkv_ref,     # (D, 3D)  pre-transposed, cols = [q | k | v]; 1/sqrt(Dh) folded into q
    bqkv_ref,     # (1, 3D)  (q part pre-scaled)
    wo_ref,       # (D, D)   pre-transposed (in, out)
    wfc_ref,      # (D, 4D)  pre-transposed
    bfc_ref,      # (1, 4D)
    wpr_ref,      # (4D, D)  pre-transposed
    o_ref,        # (N, D)
    ctx_ref,      # (N, D) f32 VMEM scratch: head contexts in contiguous lanes
    *,
    seq_len,
    n_head,
):
    N, D = x_ref.shape
    Dh = D // n_head
    n_batch = N // seq_len
    x = x_ref[...].astype(jnp.float32)

    # Hoisted parameter-row slices (kept out of the loops; no per-iter broadcasts).
    ln1_w, ln1_b = vec_ref[0:1, :], vec_ref[1:2, :]
    ln2_w, ln2_b = vec_ref[2:3, :], vec_ref[3:4, :]
    b_o, b_pr = vec_ref[4:5, :], vec_ref[5:6, :]

    # ---- LN1 -> fused QKV projection (single MXU push). Scale pre-folded. ----
    h = _layernorm(x, ln1_w, ln1_b)
    qkv = jnp.dot(h, wqkv_ref[...], preferred_element_type=jnp.float32) + bqkv_ref[...]

    contract_last = (((1,), (1,)), ((), ()))        # q @ k^T without explicit .T

    # Static unrolled loops over batches and heads (B=2, H=4 => 8 tiny iters).
    # No cross-batch bias needed; each head's (S, Dh) context is stored into
    # contiguous lanes of the (N, D) scratch so the output projection becomes a
    # single fused (N,D)@(D,D) matmul instead of 4 K=8 pushes + 3 (N,D) adds.
    for b in range(n_batch):
        r0 = b * seq_len
        for hd in range(n_head):
            c0 = hd * Dh
            q_h = qkv[r0:r0 + seq_len, c0:c0 + Dh]                       # (S, Dh)
            k_h = qkv[r0:r0 + seq_len, D + c0:D + c0 + Dh]
            v_h = qkv[r0:r0 + seq_len, 2 * D + c0:2 * D + c0 + Dh]
            s = jax.lax.dot_general(q_h, k_h, contract_last,
                                    preferred_element_type=jnp.float32)  # (S, S)
            s = s - jnp.max(s, axis=-1, keepdims=True)
            e = jnp.exp(s)
            # approx reciprocal runs on the EUP slot; rel. error << 2e-3 tolerance.
            p = e * pl.reciprocal(jnp.sum(e, axis=-1, keepdims=True), approx=True)
            ctx_ref[r0:r0 + seq_len, c0:c0 + Dh] = jnp.dot(
                p, v_h, preferred_element_type=jnp.float32)              # (S, Dh)

    # ---- single fused output projection + residual ----
    x1 = x + jnp.dot(ctx_ref[...], wo_ref[...],
                     preferred_element_type=jnp.float32) + b_o

    # ---- LN2 -> MLP (Linear, exact-erf GELU, Linear) -> residual ----
    h2 = _layernorm(x1, ln2_w, ln2_b)
    f = jnp.dot(h2, wfc_ref[...], preferred_element_type=jnp.float32) + bfc_ref[...]
    f = _gelu_exact(f)
    f = jnp.dot(f, wpr_ref[...], preferred_element_type=jnp.float32) + b_pr

    # One full-slab store.  D=32 < 128 lanes is inherently a masked vst at this
    # toy size; a real ViT D (multiple of 128) makes it lane-dense for free.
    o_ref[...] = (x1 + f).astype(o_ref.dtype)


def pack_params(p):
    """One-time wrapper-side packing: pre-transpose, fuse QKV, fold attn scale."""
    scale = 1.0 / math.sqrt(D_HEAD)
    w_qkv = jnp.concatenate([p["w_q"] * scale, p["w_k"], p["w_v"]], axis=0).T   # (D, 3D)
    b_qkv = jnp.concatenate([p["b_q"] * scale, p["b_k"], p["b_v"]], axis=1)     # (1, 3D)
    w_o = p["w_o"].T                                                            # (D, D)
    w_fc = p["w_fc"].T                                                          # (D, 4D)
    b_fc = p["b_fc"]                                                            # (1, 4D)
    w_pr = p["w_proj"].T                                                        # (4D, D)
    vecs = jnp.concatenate(
        [p["ln1_w"], p["ln1_b"], p["ln2_w"], p["ln2_b"], p["b_o"], p["b_proj"]], axis=0
    )                                                                           # (6, D)
    return vecs, w_qkv, b_qkv, w_o, w_fc, b_fc, w_pr


def transformer_encoder_block(x, packed, *, n_head=N_HEAD):
    """Single collapsed pallas_call over flattened (B*S, D) tokens.

    This is the right structure on single-TC v5e/v6e (a grid would only add
    ~0.35 us/step of overhead).  On v7x, a token-tile "parallel" grid is only
    worthwhile once per-core work exceeds the per-call fixed cost — not at this
    toy size, so it is intentionally not provided here.
    """
    B, S, D = x.shape
    assert D % n_head == 0
    vecs, w_qkv, b_qkv, w_o, w_fc, b_fc, w_pr = packed
    xt = x.reshape(B * S, D)
    kernel = partial(encoder_block_kernel, seq_len=S, n_head=n_head)
    out = pl.pallas_call(
        kernel,
        out_shape=jax.ShapeDtypeStruct((B * S, D), x.dtype),
        scratch_shapes=[pltpu.VMEM((B * S, D), jnp.float32)],
    )(xt, vecs, w_qkv, b_qkv, w_o, w_fc, b_fc, w_pr)
    return out.reshape(B, S, D)


def init_params(key):
    ks = jax.random.split(key, 12)
    scale = 0.05
    return {
        "ln1_w": 1.0 + scale * jax.random.normal(ks[0], (1, D_MODEL), jnp.float32),
        "ln1_b": scale * jax.random.normal(ks[1], (1, D_MODEL), jnp.float32),
        "w_q": scale * jax.random.normal(ks[2], (D_MODEL, D_MODEL), jnp.float32),
        "w_k": scale * jax.random.normal(ks[3], (D_MODEL, D_MODEL), jnp.float32),
        "w_v": scale * jax.random.normal(ks[4], (D_MODEL, D_MODEL), jnp.float32),
        "b_q": scale * jax.random.normal(ks[5], (1, D_MODEL), jnp.float32),
        "b_k": jnp.zeros((1, D_MODEL), jnp.float32),
        "b_v": jnp.zeros((1, D_MODEL), jnp.float32),
        "w_o": scale * jax.random.normal(ks[6], (D_MODEL, D_MODEL), jnp.float32),
        "b_o": scale * jax.random.normal(ks[7], (1, D_MODEL), jnp.float32),
        "ln2_w": 1.0 + scale * jax.random.normal(ks[8], (1, D_MODEL), jnp.float32),
        "ln2_b": scale * jax.random.normal(ks[9], (1, D_MODEL), jnp.float32),
        "w_fc": scale * jax.random.normal(ks[10], (D_FF, D_MODEL), jnp.float32),
        "b_fc": jnp.zeros((1, D_FF), jnp.float32),
        "w_proj": scale * jax.random.normal(ks[11], (D_MODEL, D_FF), jnp.float32),
        "b_proj": jnp.zeros((1, D_MODEL), jnp.float32),
    }


def reference(x, p):
    """Pure-JAX reference of the same block (unfused weights, exact-erf GELU)."""
    def ln(z, w, b):
        mu = z.mean(-1, keepdims=True)
        var = ((z - mu) ** 2).mean(-1, keepdims=True)
        return (z - mu) / jnp.sqrt(var + LN_EPS) * w[0] + b[0]

    h = ln(x, p["ln1_w"], p["ln1_b"])
    q = h @ p["w_q"].T + p["b_q"][0]
    k = h @ p["w_k"].T + p["b_k"][0]
    v = h @ p["w_v"].T + p["b_v"][0]
    B, S, _ = x.shape
    qh = q.reshape(B, S, N_HEAD, D_HEAD).transpose(0, 2, 1, 3)
    kh = k.reshape(B, S, N_HEAD, D_HEAD).transpose(0, 2, 1, 3)
    vh = v.reshape(B, S, N_HEAD, D_HEAD).transpose(0, 2, 1, 3)
    s = jnp.einsum("bhqd,bhkd->bhqk", qh, kh) / math.sqrt(D_HEAD)
    pr = jax.nn.softmax(s, axis=-1)
    o = jnp.einsum("bhqk,bhkd->bhqd", pr, vh).transpose(0, 2, 1, 3).reshape(B, S, D_MODEL)
    x1 = x + o @ p["w_o"].T + p["b_o"][0]
    h2 = ln(x1, p["ln2_w"], p["ln2_b"])
    f = _gelu_exact(h2 @ p["w_fc"].T + p["b_fc"][0]) @ p["w_proj"].T + p["b_proj"][0]
    return x1 + f


if __name__ == "__main__":
    key = jax.random.PRNGKey(0)
    kx, kp = jax.random.split(key)
    x = jax.random.normal(kx, (BATCH, SEQ, D_MODEL), jnp.float32)
    params = init_params(kp)
    packed = pack_params(params)   # one-time transpose/fuse/scale-fold, outside the kernel

    ref = jax.block_until_ready(reference(x, params))
    out = jax.block_until_ready(transformer_encoder_block(x, packed))
    np.testing.assert_allclose(np.asarray(out), np.asarray(ref), rtol=2e-3, atol=2e-3)

    print("KERNEL_OK")
</pallas_src>

<mosaic_0001>
module attributes {stable_mosaic.version = 11 : i64} {
  func.func @encoder_block_kernel(%arg0: memref<16x32xf32, #tpu.memory_space<vmem>>, %arg1: memref<6x32xf32, #tpu.memory_space<vmem>>, %arg2: memref<32x96xf32, #tpu.memory_space<vmem>>, %arg3: memref<1x96xf32, #tpu.memory_space<vmem>>, %arg4: memref<32x32xf32, #tpu.memory_space<vmem>>, %arg5: memref<32x128xf32, #tpu.memory_space<vmem>>, %arg6: memref<1x128xf32, #tpu.memory_space<vmem>>, %arg7: memref<128x32xf32, #tpu.memory_space<vmem>>, %arg8: memref<16x32xf32, #tpu.memory_space<vmem>>, %arg9: memref<16x32xf32, #tpu.memory_space<vmem>>) attributes {dimension_semantics = [], scalar_prefetch = 0 : i64, scratch_operands = 1 : i64, tpu.core_type = #tpu.core_type<tc>} {
    %c0 = arith.constant 0 : index
    %c0_0 = arith.constant 0 : index
    %0 = vector.load %arg0[%c0, %c0_0] : memref<16x32xf32, #tpu.memory_space<vmem>>, vector<16x32xf32>
    %c0_1 = arith.constant 0 : index
    %c0_2 = arith.constant 0 : index
    %1 = vector.load %arg1[%c0_1, %c0_2] : memref<6x32xf32, #tpu.memory_space<vmem>>, vector<1x32xf32>
    %c1 = arith.constant 1 : index
    %c0_3 = arith.constant 0 : index
    %2 = vector.load %arg1[%c1, %c0_3] : memref<6x32xf32, #tpu.memory_space<vmem>>, vector<1x32xf32>
    %c2 = arith.constant 2 : index
    %c0_4 = arith.constant 0 : index
    %3 = vector.load %arg1[%c2, %c0_4] : memref<6x32xf32, #tpu.memory_space<vmem>>, vector<1x32xf32>
    %c3 = arith.constant 3 : index
    %c0_5 = arith.constant 0 : index
    %4 = vector.load %arg1[%c3, %c0_5] : memref<6x32xf32, #tpu.memory_space<vmem>>, vector<1x32xf32>
    %c4 = arith.constant 4 : index
    %c0_6 = arith.constant 0 : index
    %5 = vector.load %arg1[%c4, %c0_6] : memref<6x32xf32, #tpu.memory_space<vmem>>, vector<1x32xf32>
    %c5 = arith.constant 5 : index
    %c0_7 = arith.constant 0 : index
    %6 = vector.load %arg1[%c5, %c0_7] : memref<6x32xf32, #tpu.memory_space<vmem>>, vector<1x32xf32>
    %cst = arith.constant dense<0.000000e+00> : vector<16xf32>
    %7 = vector.multi_reduction <add>, %0, %cst [1] : vector<16x32xf32> to vector<16xf32>
    %8 = vector.shape_cast %7 : vector<16xf32> to vector<16x1xf32>
    %cst_8 = arith.constant 3.200000e+01 : f32
    %9 = vector.broadcast %cst_8 : f32 to vector<16x1xf32>
    %10 = arith.divf %8, %9 : vector<16x1xf32>
    %11 = vector.broadcast %10 : vector<16x1xf32> to vector<16x32xf32>
    %12 = arith.subf %0, %11 : vector<16x32xf32>
    %13 = arith.mulf %12, %12 : vector<16x32xf32>
    %cst_9 = arith.constant dense<0.000000e+00> : vector<16xf32>
    %14 = vector.multi_reduction <add>, %13, %cst_9 [1] : vector<16x32xf32> to vector<16xf32>
    %15 = vector.shape_cast %14 : vector<16xf32> to vector<16x1xf32>
    %cst_10 = arith.constant 3.200000e+01 : f32
    %16 = vector.broadcast %cst_10 : f32 to vector<16x1xf32>
    %17 = arith.divf %15, %16 : vector<16x1xf32>
    %18 = vector.broadcast %10 : vector<16x1xf32> to vector<16x32xf32>
    %19 = arith.subf %0, %18 : vector<16x32xf32>
    %cst_11 = arith.constant 9.99999974E-6 : f32
    %20 = vector.broadcast %cst_11 : f32 to vector<16x1xf32>
    %21 = arith.addf %17, %20 : vector<16x1xf32>
    %22 = math.rsqrt %21 : vector<16x1xf32>
    %23 = vector.broadcast %22 : vector<16x1xf32> to vector<16x32xf32>
    %24 = arith.mulf %19, %23 : vector<16x32xf32>
    %25 = vector.broadcast %1 : vector<1x32xf32> to vector<16x32xf32>
    %26 = arith.mulf %24, %25 : vector<16x32xf32>
    %27 = vector.broadcast %2 : vector<1x32xf32> to vector<16x32xf32>
    %28 = arith.addf %26, %27 : vector<16x32xf32>
    %c0_12 = arith.constant 0 : index
    %c0_13 = arith.constant 0 : index
    %29 = vector.load %arg2[%c0_12, %c0_13] : memref<32x96xf32, #tpu.memory_space<vmem>>, vector<32x96xf32>
    %cst_14 = arith.constant dense<0.000000e+00> : vector<16x96xf32>
    %30 = tpu.matmul %28, %29, %cst_14 {dimension_numbers = #tpu.dot_dimension_numbers<[1], [0], [0], [1], [0, 0, 1, 1], [], []>} : vector<16x32xf32>, vector<32x96xf32>, vector<16x96xf32> -> vector<16x96xf32>
    %c0_15 = arith.constant 0 : index
    %c0_16 = arith.constant 0 : index
    %31 = vector.load %arg3[%c0_15, %c0_16] : memref<1x96xf32, #tpu.memory_space<vmem>>, vector<1x96xf32>
    %32 = vector.broadcast %31 : vector<1x96xf32> to vector<16x96xf32>
    %33 = arith.addf %30, %32 : vector<16x96xf32>
    %34 = vector.extract_strided_slice %33 {offsets = [0, 0], sizes = [8, 8], strides = [1, 1]} : vector<16x96xf32> to vector<8x8xf32>
    %35 = vector.extract_strided_slice %33 {offsets = [0, 32], sizes = [8, 8], strides = [1, 1]} : vector<16x96xf32> to vector<8x8xf32>
    %36 = vector.extract_strided_slice %33 {offsets = [0, 64], sizes = [8, 8], strides = [1, 1]} : vector<16x96xf32> to vector<8x8xf32>
    %cst_17 = arith.constant dense<0.000000e+00> : vector<8x8xf32>
    %37 = tpu.matmul %34, %35, %cst_17 {dimension_numbers = #tpu.dot_dimension_numbers<[1], [1], [0], [0], [0, 0, 1, 0], [], []>} : vector<8x8xf32>, vector<8x8xf32>, vector<8x8xf32> -> vector<8x8xf32>
    %cst_18 = arith.constant dense<0xFF800000> : vector<8xf32>
    %38 = vector.multi_reduction <maximumf>, %37, %cst_18 [1] : vector<8x8xf32> to vector<8xf32>
    %39 = vector.shape_cast %38 : vector<8xf32> to vector<8x1xf32>
    %40 = vector.broadcast %39 : vector<8x1xf32> to vector<8x8xf32>
    %41 = arith.subf %37, %40 : vector<8x8xf32>
    %42 = math.exp %41 : vector<8x8xf32>
    %cst_19 = arith.constant dense<0.000000e+00> : vector<8xf32>
    %43 = vector.multi_reduction <add>, %42, %cst_19 [1] : vector<8x8xf32> to vector<8xf32>
    %44 = vector.shape_cast %43 : vector<8xf32> to vector<8x1xf32>
    %45 = tpu.reciprocal %44 {approx = true} : vector<8x1xf32> -> vector<8x1xf32>
    %46 = vector.broadcast %45 : vector<8x1xf32> to vector<8x8xf32>
    %47 = arith.mulf %42, %46 : vector<8x8xf32>
    %cst_20 = arith.constant dense<0.000000e+00> : vector<8x8xf32>
    %48 = tpu.matmul %47, %36, %cst_20 {dimension_numbers = #tpu.dot_dimension_numbers<[1], [0], [0], [1], [0, 0, 1, 1], [], []>} : vector<8x8xf32>, vector<8x8xf32>, vector<8x8xf32> -> vector<8x8xf32>
    %c0_21 = arith.constant 0 : index
    %c0_22 = arith.constant 0 : index
    %49 = vector.load %arg9[%c0_21, %c0_22] : memref<16x32xf32, #tpu.memory_space<vmem>>, vector<8x8xf32>
    tpu.vector_store %arg9[%c0_21, %c0_22], %48 {strides = array<i32>} : memref<16x32xf32, #tpu.memory_space<vmem>>, vector<8x8xf32>,
    %50 = vector.extract_strided_slice %33 {offsets = [0, 8], sizes = [8, 8], strides = [1, 1]} : vector<16x96xf32> to vector<8x8xf32>
    %51 = vector.extract_strided_slice %33 {offsets = [0, 40], sizes = [8, 8], strides = [1, 1]} : vector<16x96xf32> to vector<8x8xf32>
    %52 = vector.extract_strided_slice %33 {offsets = [0, 72], sizes = [8, 8], strides = [1, 1]} : vector<16x96xf32> to vector<8x8xf32>
    %cst_23 = arith.constant dense<0.000000e+00> : vector<8x8xf32>
    %53 = tpu.matmul %50, %51, %cst_23 {dimension_numbers = #tpu.dot_dimension_numbers<[1], [1], [0], [0], [0, 0, 1, 0], [], []>} : vector<8x8xf32>, vector<8x8xf32>, vector<8x8xf32> -> vector<8x8xf32>
    %cst_24 = arith.constant dense<0xFF800000> : vector<8xf32>
    %54 = vector.multi_reduction <maximumf>, %53, %cst_24 [1] : vector<8x8xf32> to vector<8xf32>
    %55 = vector.shape_cast %54 : vector<8xf32> to vector<8x1xf32>
    %56 = vector.broadcast %55 : vector<8x1xf32> to vector<8x8xf32>
    %57 = arith.subf %53, %56 : vector<8x8xf32>
    %58 = math.exp %57 : vector<8x8xf32>
    %cst_25 = arith.constant dense<0.000000e+00> : vector<8xf32>
    %59 = vector.multi_reduction <add>, %58, %cst_25 [1] : vector<8x8xf32> to vector<8xf32>
    %60 = vector.shape_cast %59 : vector<8xf32> to vector<8x1xf32>
    %61 = tpu.reciprocal %60 {approx = true} : vector<8x1xf32> -> vector<8x1xf32>
    %62 = vector.broadcast %61 : vector<8x1xf32> to vector<8x8xf32>
    %63 = arith.mulf %58, %62 : vector<8x8xf32>
    %cst_26 = arith.constant dense<0.000000e+00> : vector<8x8xf32>
    %64 = tpu.matmul %63, %52, %cst_26 {dimension_numbers = #tpu.dot_dimension_numbers<[1], [0], [0], [1], [0, 0, 1, 1], [], []>} : vector<8x8xf32>, vector<8x8xf32>, vector<8x8xf32> -> vector<8x8xf32>
    %c0_27 = arith.constant 0 : index
    %c8 = arith.constant 8 : index
    %65 = vector.load %arg9[%c0_27, %c8] : memref<16x32xf32, #tpu.memory_space<vmem>>, vector<8x8xf32>
    tpu.vector_store %arg9[%c0_27, %c8], %64 {strides = array<i32>} : memref<16x32xf32, #tpu.memory_space<vmem>>, vector<8x8xf32>,
    %66 = vector.extract_strided_slice %33 {offsets = [0, 16], sizes = [8, 8], strides = [1, 1]} : vector<16x96xf32> to vector<8x8xf32>
    %67 = vector.extract_strided_slice %33 {offsets = [0, 48], sizes = [8, 8], strides = [1, 1]} : vector<16x96xf32> to vector<8x8xf32>
    %68 = vector.extract_strided_slice %33 {offsets = [0, 80], sizes = [8, 8], strides = [1, 1]} : vector<16x96xf32> to vector<8x8xf32>
    %cst_28 = arith.constant dense<0.000000e+00> : vector<8x8xf32>
    %69 = tpu.matmul %66, %67, %cst_28 {dimension_numbers = #tpu.dot_dimension_numbers<[1], [1], [0], [0], [0, 0, 1, 0], [], []>} : vector<8x8xf32>, vector<8x8xf32>, vector<8x8xf32> -> vector<8x8xf32>
    %cst_29 = arith.constant dense<0xFF800000> : vector<8xf32>
    %70 = vector.multi_reduction <maximumf>, %69, %cst_29 [1] : vector<8x8xf32> to vector<8xf32>
    %71 = vector.shape_cast %70 : vector<8xf32> to vector<8x1xf32>
    %72 = vector.broadcast %71 : vector<8x1xf32> to vector<8x8xf32>
    %73 = arith.subf %69, %72 : vector<8x8xf32>
    %74 = math.exp %73 : vector<8x8xf32>
    %cst_30 = arith.constant dense<0.000000e+00> : vector<8xf32>
    %75 = vector.multi_reduction <add>, %74, %cst_30 [1] : vector<8x8xf32> to vector<8xf32>
    %76 = vector.shape_cast %75 : vector<8xf32> to vector<8x1xf32>
    %77 = tpu.reciprocal %76 {approx = true} : vector<8x1xf32> -> vector<8x1xf32>
    %78 = vector.broadcast %77 : vector<8x1xf32> to vector<8x8xf32>
    %79 = arith.mulf %74, %78 : vector<8x8xf32>
    %cst_31 = arith.constant dense<0.000000e+00> : vector<8x8xf32>
    %80 = tpu.matmul %79, %68, %cst_31 {dimension_numbers = #tpu.dot_dimension_numbers<[1], [0], [0], [1], [0, 0, 1, 1], [], []>} : vector<8x8xf32>, vector<8x8xf32>, vector<8x8xf32> -> vector<8x8xf32>
    %c0_32 = arith.constant 0 : index
    %c16 = arith.constant 16 : index
    %81 = vector.load %arg9[%c0_32, %c16] : memref<16x32xf32, #tpu.memory_space<vmem>>, vector<8x8xf32>
    tpu.vector_store %arg9[%c0_32, %c16], %80 {strides = array<i32>} : memref<16x32xf32, #tpu.memory_space<vmem>>, vector<8x8xf32>,
    %82 = vector.extract_strided_slice %33 {offsets = [0, 24], sizes = [8, 8], strides = [1, 1]} : vector<16x96xf32> to vector<8x8xf32>
    %83 = vector.extract_strided_slice %33 {offsets = [0, 56], sizes = [8, 8], strides = [1, 1]} : vector<16x96xf32> to vector<8x8xf32>
    %84 = vector.extract_strided_slice %33 {offsets = [0, 88], sizes = [8, 8], strides = [1, 1]} : vector<16x96xf32> to vector<8x8xf32>
    %cst_33 = arith.constant dense<0.000000e+00> : vector<8x8xf32>
    %85 = tpu.matmul %82, %83, %cst_33 {dimension_numbers = #tpu.dot_dimension_numbers<[1], [1], [0], [0], [0, 0, 1, 0], [], []>} : vector<8x8xf32>, vector<8x8xf32>, vector<8x8xf32> -> vector<8x8xf32>
    %cst_34 = arith.constant dense<0xFF800000> : vector<8xf32>
    %86 = vector.multi_reduction <maximumf>, %85, %cst_34 [1] : vector<8x8xf32> to vector<8xf32>
    %87 = vector.shape_cast %86 : vector<8xf32> to vector<8x1xf32>
    %88 = vector.broadcast %87 : vector<8x1xf32> to vector<8x8xf32>
    %89 = arith.subf %85, %88 : vector<8x8xf32>
    %90 = math.exp %89 : vector<8x8xf32>
    %cst_35 = arith.constant dense<0.000000e+00> : vector<8xf32>
    %91 = vector.multi_reduction <add>, %90, %cst_35 [1] : vector<8x8xf32> to vector<8xf32>
    %92 = vector.shape_cast %91 : vector<8xf32> to vector<8x1xf32>
    %93 = tpu.reciprocal %92 {approx = true} : vector<8x1xf32> -> vector<8x1xf32>
    %94 = vector.broadcast %93 : vector<8x1xf32> to vector<8x8xf32>
    %95 = arith.mulf %90, %94 : vector<8x8xf32>
    %cst_36 = arith.constant dense<0.000000e+00> : vector<8x8xf32>
    %96 = tpu.matmul %95, %84, %cst_36 {dimension_numbers = #tpu.dot_dimension_numbers<[1], [0], [0], [1], [0, 0, 1, 1], [], []>} : vector<8x8xf32>, vector<8x8xf32>, vector<8x8xf32> -> vector<8x8xf32>
    %c0_37 = arith.constant 0 : index
    %c24 = arith.constant 24 : index
    %97 = vector.load %arg9[%c0_37, %c24] : memref<16x32xf32, #tpu.memory_space<vmem>>, vector<8x8xf32>
    tpu.vector_store %arg9[%c0_37, %c24], %96 {strides = array<i32>} : memref<16x32xf32, #tpu.memory_space<vmem>>, vector<8x8xf32>,
    %98 = vector.extract_strided_slice %33 {offsets = [8, 0], sizes = [8, 8], strides = [1, 1]} : vector<16x96xf32> to vector<8x8xf32>
    %99 = vector.extract_strided_slice %33 {offsets = [8, 32], sizes = [8, 8], strides = [1, 1]} : vector<16x96xf32> to vector<8x8xf32>
    %100 = vector.extract_strided_slice %33 {offsets = [8, 64], sizes = [8, 8], strides = [1, 1]} : vector<16x96xf32> to vector<8x8xf32>
    %cst_38 = arith.constant dense<0.000000e+00> : vector<8x8xf32>
    %101 = tpu.matmul %98, %99, %cst_38 {dimension_numbers = #tpu.dot_dimension_numbers<[1], [1], [0], [0], [0, 0, 1, 0], [], []>} : vector<8x8xf32>, vector<8x8xf32>, vector<8x8xf32> -> vector<8x8xf32>
    %cst_39 = arith.constant dense<0xFF800000> : vector<8xf32>
    %102 = vector.multi_reduction <maximumf>, %101, %cst_39 [1] : vector<8x8xf32> to vector<8xf32>
    %103 = vector.shape_cast %102 : vector<8xf32> to vector<8x1xf32>
    %104 = vector.broadcast %103 : vector<8x1xf32> to vector<8x8xf32>
    %105 = arith.subf %101, %104 : vector<8x8xf32>
    %106 = math.exp %105 : vector<8x8xf32>
    %cst_40 = arith.constant dense<0.000000e+00> : vector<8xf32>
    %107 = vector.multi_reduction <add>, %106, %cst_40 [1] : vector<8x8xf32> to vector<8xf32>
    %108 = vector.shape_cast %107 : vector<8xf32> to vector<8x1xf32>
    %109 = tpu.reciprocal %108 {approx = true} : vector<8x1xf32> -> vector<8x1xf32>
    %110 = vector.broadcast %109 : vector<8x1xf32> to vector<8x8xf32>
    %111 = arith.mulf %106, %110 : vector<8x8xf32>
    %cst_41 = arith.constant dense<0.000000e+00> : vector<8x8xf32>
    %112 = tpu.matmul %111, %100, %cst_41 {dimension_numbers = #tpu.dot_dimension_numbers<[1], [0], [0], [1], [0, 0, 1, 1], [], []>} : vector<8x8xf32>, vector<8x8xf32>, vector<8x8xf32> -> vector<8x8xf32>
    %c8_42 = arith.constant 8 : index
    %c0_43 = arith.constant 0 : index
    %113 = vector.load %arg9[%c8_42, %c0_43] : memref<16x32xf32, #tpu.memory_space<vmem>>, vector<8x8xf32>
    tpu.vector_store %arg9[%c8_42, %c0_43], %112 {strides = array<i32>} : memref<16x32xf32, #tpu.memory_space<vmem>>, vector<8x8xf32>,
    %114 = vector.extract_strided_slice %33 {offsets = [8, 8], sizes = [8, 8], strides = [1, 1]} : vector<16x96xf32> to vector<8x8xf32>
    %115 = vector.extract_strided_slice %33 {offsets = [8, 40], sizes = [8, 8], strides = [1, 1]} : vector<16x96xf32> to vector<8x8xf32>
    %116 = vector.extract_strided_slice %33 {offsets = [8, 72], sizes = [8, 8], strides = [1, 1]} : vector<16x96xf32> to vector<8x8xf32>
    %cst_44 = arith.constant dense<0.000000e+00> : vector<8x8xf32>
    %117 = tpu.matmul %114, %115, %cst_44 {dimension_numbers = #tpu.dot_dimension_numbers<[1], [1], [0], [0], [0, 0, 1, 0], [], []>} : vector<8x8xf32>, vector<8x8xf32>, vector<8x8xf32> -> vector<8x8xf32>
    %cst_45 = arith.constant dense<0xFF800000> : vector<8xf32>
    %118 = vector.multi_reduction <maximumf>, %117, %cst_45 [1] : vector<8x8xf32> to vector<8xf32>
    %119 = vector.shape_cast %118 : vector<8xf32> to vector<8x1xf32>
    %120 = vector.broadcast %119 : vector<8x1xf32> to vector<8x8xf32>
    %121 = arith.subf %117, %120 : vector<8x8xf32>
    %122 = math.exp %121 : vector<8x8xf32>
    %cst_46 = arith.constant dense<0.000000e+00> : vector<8xf32>
    %123 = vector.multi_reduction <add>, %122, %cst_46 [1] : vector<8x8xf32> to vector<8xf32>
    %124 = vector.shape_cast %123 : vector<8xf32> to vector<8x1xf32>
    %125 = tpu.reciprocal %124 {approx = true} : vector<8x1xf32> -> vector<8x1xf32>
    %126 = vector.broadcast %125 : vector<8x1xf32> to vector<8x8xf32>
    %127 = arith.mulf %122, %126 : vector<8x8xf32>
    %cst_47 = arith.constant dense<0.000000e+00> : vector<8x8xf32>
    %128 = tpu.matmul %127, %116, %cst_47 {dimension_numbers = #tpu.dot_dimension_numbers<[1], [0], [0], [1], [0, 0, 1, 1], [], []>} : vector<8x8xf32>, vector<8x8xf32>, vector<8x8xf32> -> vector<8x8xf32>
    %c8_48 = arith.constant 8 : index
    %c8_49 = arith.constant 8 : index
    %129 = vector.load %arg9[%c8_48, %c8_49] : memref<16x32xf32, #tpu.memory_space<vmem>>, vector<8x8xf32>
    tpu.vector_store %arg9[%c8_48, %c8_49], %128 {strides = array<i32>} : memref<16x32xf32, #tpu.memory_space<vmem>>, vector<8x8xf32>,
    %130 = vector.extract_strided_slice %33 {offsets = [8, 16], sizes = [8, 8], strides = [1, 1]} : vector<16x96xf32> to vector<8x8xf32>
    %131 = vector.extract_strided_slice %33 {offsets = [8, 48], sizes = [8, 8], strides = [1, 1]} : vector<16x96xf32> to vector<8x8xf32>
    %132 = vector.extract_strided_slice %33 {offsets = [8, 80], sizes = [8, 8], strides = [1, 1]} : vector<16x96xf32> to vector<8x8xf32>
    %cst_50 = arith.constant dense<0.000000e+00> : vector<8x8xf32>
    %133 = tpu.matmul %130, %131, %cst_50 {dimension_numbers = #tpu.dot_dimension_numbers<[1], [1], [0], [0], [0, 0, 1, 0], [], []>} : vector<8x8xf32>, vector<8x8xf32>, vector<8x8xf32> -> vector<8x8xf32>
    %cst_51 = arith.constant dense<0xFF800000> : vector<8xf32>
    %134 = vector.multi_reduction <maximumf>, %133, %cst_51 [1] : vector<8x8xf32> to vector<8xf32>
    %135 = vector.shape_cast %134 : vector<8xf32> to vector<8x1xf32>
    %136 = vector.broadcast %135 : vector<8x1xf32> to vector<8x8xf32>
    %137 = arith.subf %133, %136 : vector<8x8xf32>
    %138 = math.exp %137 : vector<8x8xf32>
    %cst_52 = arith.constant dense<0.000000e+00> : vector<8xf32>
    %139 = vector.multi_reduction <add>, %138, %cst_52 [1] : vector<8x8xf32> to vector<8xf32>
    %140 = vector.shape_cast %139 : vector<8xf32> to vector<8x1xf32>
    %141 = tpu.reciprocal %140 {approx = true} : vector<8x1xf32> -> vector<8x1xf32>
    %142 = vector.broadcast %141 : vector<8x1xf32> to vector<8x8xf32>
    %143 = arith.mulf %138, %142 : vector<8x8xf32>
    %cst_53 = arith.constant dense<0.000000e+00> : vector<8x8xf32>
    %144 = tpu.matmul %143, %132, %cst_53 {dimension_numbers = #tpu.dot_dimension_numbers<[1], [0], [0], [1], [0, 0, 1, 1], [], []>} : vector<8x8xf32>, vector<8x8xf32>, vector<8x8xf32> -> vector<8x8xf32>
    %c8_54 = arith.constant 8 : index
    %c16_55 = arith.constant 16 : index
    %145 = vector.load %arg9[%c8_54, %c16_55] : memref<16x32xf32, #tpu.memory_space<vmem>>, vector<8x8xf32>
    tpu.vector_store %arg9[%c8_54, %c16_55], %144 {strides = array<i32>} : memref<16x32xf32, #tpu.memory_space<vmem>>, vector<8x8xf32>,
    %146 = vector.extract_strided_slice %33 {offsets = [8, 24], sizes = [8, 8], strides = [1, 1]} : vector<16x96xf32> to vector<8x8xf32>
    %147 = vector.extract_strided_slice %33 {offsets = [8, 56], sizes = [8, 8], strides = [1, 1]} : vector<16x96xf32> to vector<8x8xf32>
    %148 = vector.extract_strided_slice %33 {offsets = [8, 88], sizes = [8, 8], strides = [1, 1]} : vector<16x96xf32> to vector<8x8xf32>
    %cst_56 = arith.constant dense<0.000000e+00> : vector<8x8xf32>
    %149 = tpu.matmul %146, %147, %cst_56 {dimension_numbers = #tpu.dot_dimension_numbers<[1], [1], [0], [0], [0, 0, 1, 0], [], []>} : vector<8x8xf32>, vector<8x8xf32>, vector<8x8xf32> -> vector<8x8xf32>
    %cst_57 = arith.constant dense<0xFF800000> : vector<8xf32>
    %150 = vector.multi_reduction <maximumf>, %149, %cst_57 [1] : vector<8x8xf32> to vector<8xf32>
    %151 = vector.shape_cast %150 : vector<8xf32> to vector<8x1xf32>
    %152 = vector.broadcast %151 : vector<8x1xf32> to vector<8x8xf32>
    %153 = arith.subf %149, %152 : vector<8x8xf32>
    %154 = math.exp %153 : vector<8x8xf32>
    %cst_58 = arith.constant dense<0.000000e+00> : vector<8xf32>
    %155 = vector.multi_reduction <add>, %154, %cst_58 [1] : vector<8x8xf32> to vector<8xf32>
    %156 = vector.shape_cast %155 : vector<8xf32> to vector<8x1xf32>
    %157 = tpu.reciprocal %156 {approx = true} : vector<8x1xf32> -> vector<8x1xf32>
    %158 = vector.broadcast %157 : vector<8x1xf32> to vector<8x8xf32>
    %159 = arith.mulf %154, %158 : vector<8x8xf32>
    %cst_59 = arith.constant dense<0.000000e+00> : vector<8x8xf32>
    %160 = tpu.matmul %159, %148, %cst_59 {dimension_numbers = #tpu.dot_dimension_numbers<[1], [0], [0], [1], [0, 0, 1, 1], [], []>} : vector<8x8xf32>, vector<8x8xf32>, vector<8x8xf32> -> vector<8x8xf32>
    %c8_60 = arith.constant 8 : index
    %c24_61 = arith.constant 24 : index
    %161 = vector.load %arg9[%c8_60, %c24_61] : memref<16x32xf32, #tpu.memory_space<vmem>>, vector<8x8xf32>
    tpu.vector_store %arg9[%c8_60, %c24_61], %160 {strides = array<i32>} : memref<16x32xf32, #tpu.memory_space<vmem>>, vector<8x8xf32>,
    %c0_62 = arith.constant 0 : index
    %c0_63 = arith.constant 0 : index
    %162 = vector.load %arg9[%c0_62, %c0_63] : memref<16x32xf32, #tpu.memory_space<vmem>>, vector<16x32xf32>
    %c0_64 = arith.constant 0 : index
    %c0_65 = arith.constant 0 : index
    %163 = vector.load %arg4[%c0_64, %c0_65] : memref<32x32xf32, #tpu.memory_space<vmem>>, vector<32x32xf32>
    %cst_66 = arith.constant dense<0.000000e+00> : vector<16x32xf32>
    %164 = tpu.matmul %162, %163, %cst_66 {dimension_numbers = #tpu.dot_dimension_numbers<[1], [0], [0], [1], [0, 0, 1, 1], [], []>} : vector<16x32xf32>, vector<32x32xf32>, vector<16x32xf32> -> vector<16x32xf32>
    %165 = arith.addf %0, %164 : vector<16x32xf32>
    %166 = vector.broadcast %5 : vector<1x32xf32> to vector<16x32xf32>
    %167 = arith.addf %165, %166 : vector<16x32xf32>
    %cst_67 = arith.constant dense<0.000000e+00> : vector<16xf32>
    %168 = vector.multi_reduction <add>, %167, %cst_67 [1] : vector<16x32xf32> to vector<16xf32>
    %169 = vector.shape_cast %168 : vector<16xf32> to vector<16x1xf32>
    %cst_68 = arith.constant 3.200000e+01 : f32
    %170 = vector.broadcast %cst_68 : f32 to vector<16x1xf32>
    %171 = arith.divf %169, %170 : vector<16x1xf32>
    %172 = vector.broadcast %171 : vector<16x1xf32> to vector<16x32xf32>
    %173 = arith.subf %167, %172 : vector<16x32xf32>
    %174 = arith.mulf %173, %173 : vector<16x32xf32>
    %cst_69 = arith.constant dense<0.000000e+00> : vector<16xf32>
    %175 = vector.multi_reduction <add>, %174, %cst_69 [1] : vector<16x32xf32> to vector<16xf32>
    %176 = vector.shape_cast %175 : vector<16xf32> to vector<16x1xf32>
    %cst_70 = arith.constant 3.200000e+01 : f32
    %177 = vector.broadcast %cst_70 : f32 to vector<16x1xf32>
    %178 = arith.divf %176, %177 : vector<16x1xf32>
    %179 = vector.broadcast %171 : vector<16x1xf32> to vector<16x32xf32>
    %180 = arith.subf %167, %179 : vector<16x32xf32>
    %cst_71 = arith.constant 9.99999974E-6 : f32
    %181 = vector.broadcast %cst_71 : f32 to vector<16x1xf32>
    %182 = arith.addf %178, %181 : vector<16x1xf32>
    %183 = math.rsqrt %182 : vector<16x1xf32>
    %184 = vector.broadcast %183 : vector<16x1xf32> to vector<16x32xf32>
    %185 = arith.mulf %180, %184 : vector<16x32xf32>
    %186 = vector.broadcast %3 : vector<1x32xf32> to vector<16x32xf32>
    %187 = arith.mulf %185, %186 : vector<16x32xf32>
    %188 = vector.broadcast %4 : vector<1x32xf32> to vector<16x32xf32>
    %189 = arith.addf %187, %188 : vector<16x32xf32>
    %c0_72 = arith.constant 0 : index
    %c0_73 = arith.constant 0 : index
    %190 = vector.load %arg5[%c0_72, %c0_73] : memref<32x128xf32, #tpu.memory_space<vmem>>, vector<32x128xf32>
    %cst_74 = arith.constant dense<0.000000e+00> : vector<16x128xf32>
    %191 = tpu.matmul %189, %190, %cst_74 {dimension_numbers = #tpu.dot_dimension_numbers<[1], [0], [0], [1], [0, 0, 1, 1], [], []>} : vector<16x32xf32>, vector<32x128xf32>, vector<16x128xf32> -> vector<16x128xf32>
    %c0_75 = arith.constant 0 : index
    %c0_76 = arith.constant 0 : index
    %192 = vector.load %arg6[%c0_75, %c0_76] : memref<1x128xf32, #tpu.memory_space<vmem>>, vector<1x128xf32>
    %193 = vector.broadcast %192 : vector<1x128xf32> to vector<16x128xf32>
    %194 = arith.addf %191, %193 : vector<16x128xf32>
    %cst_77 = arith.constant 5.000000e-01 : f32
    %195 = vector.broadcast %cst_77 : f32 to vector<16x128xf32>
    %196 = arith.mulf %195, %194 : vector<16x128xf32>
    %cst_78 = arith.constant 0.707106769 : f32
    %197 = vector.broadcast %cst_78 : f32 to vector<16x128xf32>
    %198 = arith.mulf %194, %197 : vector<16x128xf32>
    %199 = math.erf %198 : vector<16x128xf32>
    %cst_79 = arith.constant 1.000000e+00 : f32
    %200 = vector.broadcast %cst_79 : f32 to vector<16x128xf32>
    %201 = arith.addf %200, %199 : vector<16x128xf32>
    %202 = arith.mulf %196, %201 : vector<16x128xf32>
    %c0_80 = arith.constant 0 : index
    %c0_81 = arith.constant 0 : index
    %203 = vector.load %arg7[%c0_80, %c0_81] : memref<128x32xf32, #tpu.memory_space<vmem>>, vector<128x32xf32>
    %cst_82 = arith.constant dense<0.000000e+00> : vector<16x32xf32>
    %204 = tpu.matmul %202, %203, %cst_82 {dimension_numbers = #tpu.dot_dimension_numbers<[1], [0], [0], [1], [0, 0, 1, 1], [], []>} : vector<16x128xf32>, vector<128x32xf32>, vector<16x32xf32> -> vector<16x32xf32>
    %205 = vector.broadcast %6 : vector<1x32xf32> to vector<16x32xf32>
    %206 = arith.addf %204, %205 : vector<16x32xf32>
    %207 = arith.addf %167, %206 : vector<16x32xf32>
    %c0_83 = arith.constant 0 : index
    %c0_84 = arith.constant 0 : index
    %208 = vector.load %arg8[%c0_83, %c0_84] : memref<16x32xf32, #tpu.memory_space<vmem>>, vector<16x32xf32>
    tpu.vector_store %arg8[%c0_83, %c0_84], %207 {strides = array<i32>} : memref<16x32xf32, #tpu.memory_space<vmem>>, vector<16x32xf32>,
    return
  }
}

</mosaic_0001>

<llo_original>
// kernel: tpu_custom_call.1
$region0: #{tpu_custom_call.1}
  #allocation0 [shape = 'u32[]', space=smem, size = 0x4, offset = 0x4, fixed_abs, tag = 'smem constant byte address 0x4 - core index']
  #allocation1 [shape = 'u32[144,128]{1,0:T(1,128)}', space=vmem, size = 0x12000, scoped, tag = 'internal scratch']
  #allocation2 [shape = 'f32[16,32]{1,0:T(8,128)}', space=vmem, size = 0x2000, scoped, tag = 'scratch operand']
  %s0 = inlined_call_operand.vmem [shape: f32[16,32], index: 0, kind: input, shape index: {}]
  %s1 = inlined_call_operand.vmem [shape: f32[6,32], index: 1, kind: input, shape index: {}]
  %s2 = inlined_call_operand.vmem [shape: f32[32,96], index: 2, kind: input, shape index: {}]
  %s3 = inlined_call_operand.vmem [shape: f32[1,96], index: 3, kind: input, shape index: {}]
  %s4 = inlined_call_operand.vmem [shape: f32[32,32], index: 4, kind: input, shape index: {}]
  %s5 = inlined_call_operand.vmem [shape: f32[32,128], index: 5, kind: input, shape index: {}]
  %s6 = inlined_call_operand.vmem [shape: f32[1,128], index: 6, kind: input, shape index: {}]
  %s7 = inlined_call_operand.vmem [shape: f32[128,32], index: 7, kind: input, shape index: {}]
  %s8 = inlined_call_operand.hbm [shape: f32[16,32], index: 8, kind: output, shape index: {}]
  %s9 = sld [smem:[#allocation0]]
  $region42: #{tpu_custom_call.1} parent=0
    _
  %s11 = ssub.s32 1, %s9
  %s12 = scalar_select 0, %s11, %s9
  $region1: #{tpu_custom_call.1} parent=0
    #allocation3 [shape = 'u8[8192]{0}', space=vmem, size = 0x2000, scoped, tag = 'output window, operand 0, single buffered']
    #allocation4 [shape = 's32[1]{0}', space=sflag, size = 0x4, scoped, tag = 'scoped memory for tpu_custom_call.1']
    %13 = vsyncpa [#allocation4], 0
    // Predicated region
    $region2: #{tpu_custom_call.1} parent=1 // pred_check
      _
    $region3: #{tpu_custom_call.1} parent=1 // pred_check_branch
      %15 = sbr.rel (0) target = $region5
    $region4: #{tpu_custom_call.1} parent=1 // pred_region
      _
    $region5: #{tpu_custom_call.1} parent=1 // pred_fallthru
      _
    // Predicated region
    $region6: #{tpu_custom_call.1} parent=1 // pred_check
      _
    $region7: #{tpu_custom_call.1} parent=1 // pred_check_branch
      %17 = sbr.rel (0) target = $region9
    $region8: #{tpu_custom_call.1} parent=1 // pred_region
      _
    $region9: #{tpu_custom_call.1} parent=1 // pred_fallthru
      _
    // Predicated region
    $region10: #{tpu_custom_call.1} parent=1 // pred_check
      _
    $region11: #{tpu_custom_call.1} parent=1 // pred_check_branch
      %19 = sbr.rel (0) target = $region13
    $region12: #{tpu_custom_call.1} parent=1 // pred_region
      _
    $region13: #{tpu_custom_call.1} parent=1 // pred_fallthru
      _
    // Predicated region
    $region14: #{tpu_custom_call.1} parent=1 // pred_check
      _
    $region15: #{tpu_custom_call.1} parent=1 // pred_check_branch
      %21 = sbr.rel (0) target = $region17
    $region16: #{tpu_custom_call.1} parent=1 // pred_region
      _
    $region17: #{tpu_custom_call.1} parent=1 // pred_fallthru
      _
    // Predicated region
    $region18: #{tpu_custom_call.1} parent=1 // pred_check
      _
    $region19: #{tpu_custom_call.1} parent=1 // pred_check_branch
      %23 = sbr.rel (0) target = $region21
    $region20: #{tpu_custom_call.1} parent=1 // pred_region
      _
    $region21: #{tpu_custom_call.1} parent=1 // pred_fallthru
      _
    // Predicated region
    $region22: #{tpu_custom_call.1} parent=1 // pred_check
      _
    $region23: #{tpu_custom_call.1} parent=1 // pred_check_branch
      %25 = sbr.rel (0) target = $region25
    $region24: #{tpu_custom_call.1} parent=1 // pred_region
      _
    $region25: #{tpu_custom_call.1} parent=1 // pred_fallthru
      _
    // Predicated region
    $region26: #{tpu_custom_call.1} parent=1 // pred_check
      _
    $region27: #{tpu_custom_call.1} parent=1 // pred_check_branch
      %27 = sbr.rel (0) target = $region29
    $region28: #{tpu_custom_call.1} parent=1 // pred_region
      _
    $region29: #{tpu_custom_call.1} parent=1 // pred_fallthru
      _
    // Predicated region
    $region30: #{tpu_custom_call.1} parent=1 // pred_check
      _
    $region31: #{tpu_custom_call.1} parent=1 // pred_check_branch
      %29 = sbr.rel (0) target = $region33
    $region32: #{tpu_custom_call.1} parent=1 // pred_region
      _
    $region33: #{tpu_custom_call.1} parent=1 // pred_fallthru
      _
    %v30 = vld [vmem:[%s0] sm:$0xff]
    %v31 = vld [vmem:[%s0 + $0x8] sm:$0xff]
    %v32 = vld [vmem:[%s1] sm:$0x1]
    %v33 = vld [vmem:[%s1 + $0x1] sm:$0x1]
    %v34 = vld [vmem:[%s1 + $0x2] sm:$0x1]
    %v35 = vld [vmem:[%s1 + $0x3] sm:$0x1]
    %v36 = vld [vmem:[%s1 + $0x4] sm:$0x1]
    %v37 = vld [vmem:[%s1 + $0x5] sm:$0x1]
    %vm38 = vcmask 261120
    %v39 = vsel %vm38, %v30, 0.0
    %40 = vadd.xlane.f32.xlu0 %v39
    %v41 = vpop.xlane.xlu0 %40
    %v42 = vsel %vm38, %v31, 0.0
    %43 = vadd.xlane.f32.xlu0 %v42
    %v44 = vpop.xlane.xlu0 %43
    %v45 = vrcp.pop 32.0
    %v46 = vmul.f32 %v41, %v45
    %v47 = vmul.f32 %v44, %v45
    %v48 = vsub.f32 %v30, %v46
    %v49 = vsub.f32 %v31, %v47
    %v50 = vmul.f32 %v48, %v48
    %v51 = vmul.f32 %v49, %v49
    %v52 = vsel %vm38, %v50, 0.0
    %53 = vadd.xlane.f32.xlu0 %v52
    %v54 = vpop.xlane.xlu0 %53
    %v55 = vsel %vm38, %v51, 0.0
    %56 = vadd.xlane.f32.xlu0 %v55
    %v57 = vpop.xlane.xlu0 %56
    %v58 = vmul.f32 %v54, %v45
    %v59 = vmul.f32 %v57, %v45
    %v60 = vadd.f32 %v58, 1e-05
    %v61 = vadd.f32 %v59, 1e-05
    %v62 = vrsqrt.pop %v60
    %v63 = vrsqrt.pop %v61
    %v64 = vmul.f32 %v48, %v62
    %v65 = vmul.f32 %v49, %v63
    %v66 = vlaneseq
    %v67 = vshrl.u32 %v66, 7
    %v68 = vsub.s32 0, %v67
    %v69 = vrot.slane %v32, %v68
    %v70 = vmul.f32 %v64, %v69
    %v71 = vmul.f32 %v65, %v69
    %v72 = vlaneseq
    %v73 = vshrl.u32 %v72, 7
    %v74 = vsub.s32 0, %v73
    %v75 = vrot.slane %v33, %v74
    %v76 = vadd.f32 %v70, %v75
    %v77 = vadd.f32 %v71, %v75
    %v78 = vld [vmem:[%s2] sm:$0xff]
    %v79 = vld [vmem:[%s2 + $0x8] sm:$0xff]
    %v80 = vld [vmem:[%s2 + $0x10] sm:$0xff]
    %v81 = vld [vmem:[%s2 + $0x18] sm:$0xff]
    %v82 = vld [vmem:[%s3] sm:$0x1]
    %v84 = vlaneseq
    %v85 = vshrl.u32 %v84, 7
    %v86 = vsub.s32 0, %v85
    %v87 = vrot.slane %v82, %v86
    %v90 = vsel %vm38, %v76, 0
    %v93 = vsel %vm38, %v77, 0
    %95 = vmatprep.subr.mxu0 0.0
    %96 = vmatpush1.msra.mxu0 %v78
    %97 = vmatprep.subr.mxu0 0.0
    %98 = vmatpush1.msra.mxu0 %v79
    %99 = vmatprep.subr.mxu0 0.0
    %100 = vmatpush1.msra.mxu0 %v80
    %101 = vmatprep.subr.mxu0 0.0
    %102 = vmatpush1.msra.mxu0 %v81
    %103 = vmatprep.subr.mxu0 0.0
    %104 = vmatpush1.msra.mxu0 0.0
    %105 = vmatprep.subr.mxu0 0.0
    %106 = vmatpush1.msra.mxu0 0.0
    %107 = vmatprep.subr.mxu0 0.0
    %108 = vmatpush1.msra.mxu0 0.0
    %109 = vmatprep.subr.mxu0 0.0
    %110 = vmatpush1.msra.mxu0 0.0
    %111 = vmatprep.subr.mxu0 0.0
    %112 = vmatpush1.msra.mxu0 0.0
    %113 = vmatprep.subr.mxu0 0.0
    %114 = vmatpush1.msra.mxu0 0.0
    %115 = vmatprep.subr.mxu0 0.0
    %116 = vmatpush1.msra.mxu0 0.0
    %117 = vmatprep.subr.mxu0 0.0
    %118 = vmatpush1.msra.mxu0 0.0
    %119 = vmatprep.subr.mxu0 0.0
    %120 = vmatpush1.msra.mxu0 0.0
    %121 = vmatprep.subr.mxu0 0.0
    %122 = vmatpush1.msra.mxu0 0.0
    %123 = vmatprep.subr.mxu0 0.0
    %124 = vmatpush1.msra.mxu0 0.0
    %125 = vmatprep.subr.mxu0 0.0
    %126 = vmatpush1.msra.mxu0 0.0
    %127 = vmatprep.subr.mxu0 0.0
    %128 = vmatpush1.msra.mxu0 0.0
    %129 = vmatprep.subr.mxu0 0.0
    %130 = vmatpush1.msra.mxu0 0.0
    %131 = vmatprep.subr.mxu0 0.0
    %132 = vmatpush1.msra.mxu0 0.0
    %133 = vmatprep.subr.mxu0 0.0
    %134 = vmatpush1.msra.mxu0 0.0
    %135 = vmatprep.subr.mxu0 0.0
    %136 = vmatpush1.msra.mxu0 0.0
    %137 = vmatprep.subr.mxu0 0.0
    %138 = vmatpush1.msra.mxu0 0.0
    %139 = vmatprep.subr.mxu0 0.0
    %140 = vmatpush1.msra.mxu0 0.0
    %141 = vmatprep.subr.mxu0 0.0
    %142 = vmatpush1.msra.mxu0 0.0
    %143 = vmatprep.subr.mxu0 0.0
    %144 = vmatpush1.msra.mxu0 0.0
    %145 = vmatprep.subr.mxu0 0.0
    %146 = vmatpush1.msra.mxu0 0.0
    %147 = vmatprep.subr.mxu0 0.0
    %148 = vmatpush1.msra.mxu0 0.0
    %149 = vmatprep.subr.mxu0 0.0
    %150 = vmatpush1.msra.mxu0 0.0
    %151 = vmatprep.subr.mxu0 0.0
    %152 = vmatpush1.msra.mxu0 0.0
    %153 = vmatprep.subr.mxu0 0.0
    %154 = vmatpush1.msra.mxu0 0.0
    %155 = vmatprep.subr.mxu0 0.0
    %156 = vmatpush1.msra.mxu0 0.0
    %157 = vmatprep.subr.mxu0 0.0
    %158 = vmatpush1.msra.mxu0 0.0
    %159 = vmatprep.mubr.f32.mxu0 0.0
    %160 = vmatmul.mubr.f32.gmra.mrb[0].mxu0 %v90
    %v161 = vpop.f32.mrb[0].mxu0
    %v162 = vadd.f32 %v87, %v161
    %v163 = vpop.f32.mrb[0].mxu0
    %164 = vmatprep.mubr.f32.mxu0 0.0
    %165 = vmatmul.mubr.f32.gmra.mrb[0].mxu0 %v93
    %v166 = vpop.f32.mrb[0].mxu0
    %v167 = vadd.f32 %v87, %v166
    %v168 = vpop.f32.mrb[0].mxu0
    %169 = vdwg.mxu0
    %171 = vrot.lane.b32.xlu0 %v162, 96
    %v172 = vpop.permute.xlu0 %171
    %vm173 = vcmask 64512
    %v174 = vsel %vm173, %v162, 0
    %v176 = vsel %vm173, %v172, 0
    %178 = vmatprep.subr.mxu0 0.0
    %179 = vmatpush1.xpose.msra.mxu0 %v176
    %180 = vmatprep.subr.mxu0 0.0
    %181 = vmatpush1.xpose.msra.mxu0 0.0
    %182 = vmatprep.subr.mxu0 0.0
    %183 = vmatpush1.xpose.msra.mxu0 0.0
    %184 = vmatprep.subr.mxu0 0.0
    %185 = vmatpush1.xpose.msra.mxu0 0.0
    %186 = vmatprep.subr.mxu0 0.0
    %187 = vmatpush1.xpose.msra.mxu0 0.0
    %188 = vmatprep.subr.mxu0 0.0
    %189 = vmatpush1.xpose.msra.mxu0 0.0
    %190 = vmatprep.subr.mxu0 0.0
    %191 = vmatpush1.xpose.msra.mxu0 0.0
    %192 = vmatprep.subr.mxu0 0.0
    %193 = vmatpush1.xpose.msra.mxu0 0.0
    %194 = vmatprep.subr.mxu0 0.0
    %195 = vmatpush1.xpose.msra.mxu0 0.0
    %196 = vmatprep.subr.mxu0 0.0
    %197 = vmatpush1.xpose.msra.mxu0 0.0
    %198 = vmatprep.subr.mxu0 0.0
    %199 = vmatpush1.xpose.msra.mxu0 0.0
    %200 = vmatprep.subr.mxu0 0.0
    %201 = vmatpush1.xpose.msra.mxu0 0.0
    %202 = vmatprep.subr.mxu0 0.0
    %203 = vmatpush1.xpose.msra.mxu0 0.0
    %204 = vmatprep.subr.mxu0 0.0
    %205 = vmatpush1.xpose.msra.mxu0 0.0
    %206 = vmatprep.subr.mxu0 0.0
    %207 = vmatpush1.xpose.msra.mxu0 0.0
    %208 = vmatprep.subr.mxu0 0.0
    %209 = vmatpush1.xpose.msra.mxu0 0.0
    %210 = vmatprep.subr.mxu0 0.0
    %211 = vmatpush1.xpose.msra.mxu0 0.0
    %212 = vmatprep.subr.mxu0 0.0
    %213 = vmatpush1.xpose.msra.mxu0 0.0
    %214 = vmatprep.subr.mxu0 0.0
    %215 = vmatpush1.xpose.msra.mxu0 0.0
    %216 = vmatprep.subr.mxu0 0.0
    %217 = vmatpush1.xpose.msra.mxu0 0.0
    %218 = vmatprep.subr.mxu0 0.0
    %219 = vmatpush1.xpose.msra.mxu0 0.0
    %220 = vmatprep.subr.mxu0 0.0
    %221 = vmatpush1.xpose.msra.mxu0 0.0
    %222 = vmatprep.subr.mxu0 0.0
    %223 = vmatpush1.xpose.msra.mxu0 0.0
    %224 = vmatprep.subr.mxu0 0.0
    %225 = vmatpush1.xpose.msra.mxu0 0.0
    %226 = vmatprep.subr.mxu0 0.0
    %227 = vmatpush1.xpose.msra.mxu0 0.0
    %228 = vmatprep.subr.mxu0 0.0
    %229 = vmatpush1.xpose.msra.mxu0 0.0
    %230 = vmatprep.subr.mxu0 0.0
    %231 = vmatpush1.xpose.msra.mxu0 0.0
    %232 = vmatprep.subr.mxu0 0.0
    %233 = vmatpush1.xpose.msra.mxu0 0.0
    %234 = vmatprep.subr.mxu0 0.0
    %235 = vmatpush1.xpose.msra.mxu0 0.0
    %236 = vmatprep.subr.mxu0 0.0
    %237 = vmatpush1.xpose.msra.mxu0 0.0
    %238 = vmatprep.subr.mxu0 0.0
    %239 = vmatpush1.xpose.msra.mxu0 0.0
    %240 = vmatprep.subr.mxu0 0.0
    %241 = vmatpush1.xpose.msra.mxu0 0.0
    %242 = vmatprep.mubr.f32.mxu0 0.0
    %243 = vmatmul.mubr.f32.gmra.mrb[0].mxu0 %v174
    %v244 = vpop.f32.mrb[0].mxu0
    %v245 = vadd.f32 0.0, %v244
    %v246 = vpop.f32.mrb[0].mxu0
    %247 = vdwg.mxu0
    %v248 = vsel %vm173, %v245, -inf
    %249 = vmax.xlane.f32.xlu0 %v248
    %v250 = vpop.xlane.xlu0 %249
    %v251 = vsub.f32 %v245, %v250
    %v252 = vmul.f32 %v251, 1.442695
    %v253 = vpow.pop %v252
    %v254 = vsel %vm173, %v253, 0.0
    %255 = vadd.xlane.f32.xlu0 %v254
    %v256 = vpop.xlane.xlu0 %255
    %v257 = vrcp.pop %v256
    %v258 = vmul.f32 %v253, %v257
    %259 = vrot.lane.b32.xlu0 %v162, 64
    %v260 = vpop.permute.xlu0 %259
    %v263 = vsel %vm173, %v258, 0
    %265 = vmatprep.subr.mxu0 0.0
    %266 = vmatpush1.msra.mxu0 %v260
    %267 = vmatprep.subr.mxu0 0.0
    %268 = vmatpush1.msra.mxu0 0.0
    %269 = vmatprep.subr.mxu0 0.0
    %270 = vmatpush1.msra.mxu0 0.0
    %271 = vmatprep.subr.mxu0 0.0
    %272 = vmatpush1.msra.mxu0 0.0
    %273 = vmatprep.subr.mxu0 0.0
    %274 = vmatpush1.msra.mxu0 0.0
    %275 = vmatprep.subr.mxu0 0.0
    %276 = vmatpush1.msra.mxu0 0.0
    %277 = vmatprep.subr.mxu0 0.0
    %278 = vmatpush1.msra.mxu0 0.0
    %279 = vmatprep.subr.mxu0 0.0
    %280 = vmatpush1.msra.mxu0 0.0
    %281 = vmatprep.subr.mxu0 0.0
    %282 = vmatpush1.msra.mxu0 0.0
    %283 = vmatprep.subr.mxu0 0.0
    %284 = vmatpush1.msra.mxu0 0.0
    %285 = vmatprep.subr.mxu0 0.0
    %286 = vmatpush1.msra.mxu0 0.0
    %287 = vmatprep.subr.mxu0 0.0
    %288 = vmatpush1.msra.mxu0 0.0
    %289 = vmatprep.subr.mxu0 0.0
    %290 = vmatpush1.msra.mxu0 0.0
    %291 = vmatprep.subr.mxu0 0.0
    %292 = vmatpush1.msra.mxu0 0.0
    %293 = vmatprep.subr.mxu0 0.0
    %294 = vmatpush1.msra.mxu0 0.0
    %295 = vmatprep.subr.mxu0 0.0
    %296 = vmatpush1.msra.mxu0 0.0
    %297 = vmatprep.subr.mxu0 0.0
    %298 = vmatpush1.msra.mxu0 0.0
    %299 = vmatprep.subr.mxu0 0.0
    %300 = vmatpush1.msra.mxu0 0.0
    %301 = vmatprep.subr.mxu0 0.0
    %302 = vmatpush1.msra.mxu0 0.0
    %303 = vmatprep.subr.mxu0 0.0
    %304 = vmatpush1.msra.mxu0 0.0
    %305 = vmatprep.subr.mxu0 0.0
    %306 = vmatpush1.msra.mxu0 0.0
    %307 = vmatprep.subr.mxu0 0.0
    %308 = vmatpush1.msra.mxu0 0.0
    %309 = vmatprep.subr.mxu0 0.0
    %310 = vmatpush1.msra.mxu0 0.0
    %311 = vmatprep.subr.mxu0 0.0
    %312 = vmatpush1.msra.mxu0 0.0
    %313 = vmatprep.subr.mxu0 0.0
    %314 = vmatpush1.msra.mxu0 0.0
    %315 = vmatprep.subr.mxu0 0.0
    %316 = vmatpush1.msra.mxu0 0.0
    %317 = vmatprep.subr.mxu0 0.0
    %318 = vmatpush1.msra.mxu0 0.0
    %319 = vmatprep.subr.mxu0 0.0
    %320 = vmatpush1.msra.mxu0 0.0
    %321 = vmatprep.subr.mxu0 0.0
    %322 = vmatpush1.msra.mxu0 0.0
    %323 = vmatprep.subr.mxu0 0.0
    %324 = vmatpush1.msra.mxu0 0.0
    %325 = vmatprep.subr.mxu0 0.0
    %326 = vmatpush1.msra.mxu0 0.0
    %327 = vmatprep.subr.mxu0 0.0
    %328 = vmatpush1.msra.mxu0 0.0
    %329 = vmatprep.mubr.f32.mxu0 0.0
    %330 = vmatmul.mubr.f32.gmra.mrb[0].mxu0 %v263
    %v331 = vpop.f32.mrb[0].mxu0
    %v332 = vadd.f32 0.0, %v331
    %v333 = vpop.f32.mrb[0].mxu0
    %334 = vdwg.mxu0
    %335 = vst.msk [vmem:[#allocation2] sm:$0xff] %vm173, %v332
    %336 = vrot.lane.b32.xlu0 %v162, 120
    %v337 = vpop.permute.xlu0 %336
    %338 = vrot.lane.b32.xlu0 %v162, 88
    %v339 = vpop.permute.xlu0 %338
    %v340 = vsel %vm173, %v337, 0
    %v342 = vsel %vm173, %v339, 0
    %344 = vmatprep.subr.mxu0 0.0
    %345 = vmatpush1.xpose.msra.mxu0 %v342
    %346 = vmatprep.subr.mxu0 0.0
    %347 = vmatpush1.xpose.msra.mxu0 0.0
    %348 = vmatprep.subr.mxu0 0.0
    %349 = vmatpush1.xpose.msra.mxu0 0.0
    %350 = vmatprep.subr.mxu0 0.0
    %351 = vmatpush1.xpose.msra.mxu0 0.0
    %352 = vmatprep.subr.mxu0 0.0
    %353 = vmatpush1.xpose.msra.mxu0 0.0
    %354 = vmatprep.subr.mxu0 0.0
    %355 = vmatpush1.xpose.msra.mxu0 0.0
    %356 = vmatprep.subr.mxu0 0.0
    %357 = vmatpush1.xpose.msra.mxu0 0.0
    %358 = vmatprep.subr.mxu0 0.0
    %359 = vmatpush1.xpose.msra.mxu0 0.0
    %360 = vmatprep.subr.mxu0 0.0
    %361 = vmatpush1.xpose.msra.mxu0 0.0
    %362 = vmatprep.subr.mxu0 0.0
    %363 = vmatpush1.xpose.msra.mxu0 0.0
    %364 = vmatprep.subr.mxu0 0.0
    %365 = vmatpush1.xpose.msra.mxu0 0.0
    %366 = vmatprep.subr.mxu0 0.0
    %367 = vmatpush1.xpose.msra.mxu0 0.0
    %368 = vmatprep.subr.mxu0 0.0
    %369 = vmatpush1.xpose.msra.mxu0 0.0
    %370 = vmatprep.subr.mxu0 0.0
    %371 = vmatpush1.xpose.msra.mxu0 0.0
    %372 = vmatprep.subr.mxu0 0.0
    %373 = vmatpush1.xpose.msra.mxu0 0.0
    %374 = vmatprep.subr.mxu0 0.0
    %375 = vmatpush1.xpose.msra.mxu0 0.0
    %376 = vmatprep.subr.mxu0 0.0
    %377 = vmatpush1.xpose.msra.mxu0 0.0
    %378 = vmatprep.subr.mxu0 0.0
    %379 = vmatpush1.xpose.msra.mxu0 0.0
    %380 = vmatprep.subr.mxu0 0.0
    %381 = vmatpush1.xpose.msra.mxu0 0.0
    %382 = vmatprep.subr.mxu0 0.0
    %383 = vmatpush1.xpose.msra.mxu0 0.0
    %384 = vmatprep.subr.mxu0 0.0
    %385 = vmatpush1.xpose.msra.mxu0 0.0
    %386 = vmatprep.subr.mxu0 0.0
    %387 = vmatpush1.xpose.msra.mxu0 0.0
    %388 = vmatprep.subr.mxu0 0.0
    %389 = vmatpush1.xpose.msra.mxu0 0.0
    %390 = vmatprep.subr.mxu0 0.0
    %391 = vmatpush1.xpose.msra.mxu0 0.0
    %392 = vmatprep.subr.mxu0 0.0
    %393 = vmatpush1.xpose.msra.mxu0 0.0
    %394 = vmatprep.subr.mxu0 0.0
    %395 = vmatpush1.xpose.msra.mxu0 0.0
    %396 = vmatprep.subr.mxu0 0.0
    %397 = vmatpush1.xpose.msra.mxu0 0.0
    %398 = vmatprep.subr.mxu0 0.0
    %399 = vmatpush1.xpose.msra.mxu0 0.0
    %400 = vmatprep.subr.mxu0 0.0
    %401 = vmatpush1.xpose.msra.mxu0 0.0
    %402 = vmatprep.subr.mxu0 0.0
    %403 = vmatpush1.xpose.msra.mxu0 0.0
    %404 = vmatprep.subr.mxu0 0.0
    %405 = vmatpush1.xpose.msra.mxu0 0.0
    %406 = vmatprep.subr.mxu0 0.0
    %407 = vmatpush1.xpose.msra.mxu0 0.0
    %408 = vmatprep.mubr.f32.mxu0 0.0
    %409 = vmatmul.mubr.f32.gmra.mrb[0].mxu0 %v340
    %v410 = vpop.f32.mrb[0].mxu0
    %v411 = vadd.f32 0.0, %v410
    %v412 = vpop.f32.mrb[0].mxu0
    %413 = vdwg.mxu0
    %v414 = vsel %vm173, %v411, -inf
    %415 = vmax.xlane.f32.xlu0 %v414
    %v416 = vpop.xlane.xlu0 %415
    %v417 = vsub.f32 %v411, %v416
    %v418 = vmul.f32 %v417, 1.442695
    %v419 = vpow.pop %v418
    %v420 = vsel %vm173, %v419, 0.0
    %421 = vadd.xlane.f32.xlu0 %v420
    %v422 = vpop.xlane.xlu0 %421
    %v423 = vrcp.pop %v422
    %v424 = vmul.f32 %v419, %v423
    %425 = vrot.lane.b32.xlu0 %v162, 56
    %v426 = vpop.permute.xlu0 %425
    %v429 = vsel %vm173, %v424, 0
    %431 = vmatprep.subr.mxu0 0.0
    %432 = vmatpush1.msra.mxu0 %v426
    %433 = vmatprep.subr.mxu0 0.0
    %434 = vmatpush1.msra.mxu0 0.0
    %435 = vmatprep.subr.mxu0 0.0
    %436 = vmatpush1.msra.mxu0 0.0
    %437 = vmatprep.subr.mxu0 0.0
    %438 = vmatpush1.msra.mxu0 0.0
    %439 = vmatprep.subr.mxu0 0.0
    %440 = vmatpush1.msra.mxu0 0.0
    %441 = vmatprep.subr.mxu0 0.0
    %442 = vmatpush1.msra.mxu0 0.0
    %443 = vmatprep.subr.mxu0 0.0
    %444 = vmatpush1.msra.mxu0 0.0
    %445 = vmatprep.subr.mxu0 0.0
    %446 = vmatpush1.msra.mxu0 0.0
    %447 = vmatprep.subr.mxu0 0.0
    %448 = vmatpush1.msra.mxu0 0.0
    %449 = vmatprep.subr.mxu0 0.0
    %450 = vmatpush1.msra.mxu0 0.0
    %451 = vmatprep.subr.mxu0 0.0
    %452 = vmatpush1.msra.mxu0 0.0
    %453 = vmatprep.subr.mxu0 0.0
    %454 = vmatpush1.msra.mxu0 0.0
    %455 = vmatprep.subr.mxu0 0.0
    %456 = vmatpush1.msra.mxu0 0.0
    %457 = vmatprep.subr.mxu0 0.0
    %458 = vmatpush1.msra.mxu0 0.0
    %459 = vmatprep.subr.mxu0 0.0
    %460 = vmatpush1.msra.mxu0 0.0
    %461 = vmatprep.subr.mxu0 0.0
    %462 = vmatpush1.msra.mxu0 0.0
    %463 = vmatprep.subr.mxu0 0.0
    %464 = vmatpush1.msra.mxu0 0.0
    %465 = vmatprep.subr.mxu0 0.0
    %466 = vmatpush1.msra.mxu0 0.0
    %467 = vmatprep.subr.mxu0 0.0
    %468 = vmatpush1.msra.mxu0 0.0
    %469 = vmatprep.subr.mxu0 0.0
    %470 = vmatpush1.msra.mxu0 0.0
    %471 = vmatprep.subr.mxu0 0.0
    %472 = vmatpush1.msra.mxu0 0.0
    %473 = vmatprep.subr.mxu0 0.0
    %474 = vmatpush1.msra.mxu0 0.0
    %475 = vmatprep.subr.mxu0 0.0
    %476 = vmatpush1.msra.mxu0 0.0
    %477 = vmatprep.subr.mxu0 0.0
    %478 = vmatpush1.msra.mxu0 0.0
    %479 = vmatprep.subr.mxu0 0.0
    %480 = vmatpush1.msra.mxu0 0.0
    %481 = vmatprep.subr.mxu0 0.0
    %482 = vmatpush1.msra.mxu0 0.0
    %483 = vmatprep.subr.mxu0 0.0
    %484 = vmatpush1.msra.mxu0 0.0
    %485 = vmatprep.subr.mxu0 0.0
    %486 = vmatpush1.msra.mxu0 0.0
    %487 = vmatprep.subr.mxu0 0.0
    %488 = vmatpush1.msra.mxu0 0.0
    %489 = vmatprep.subr.mxu0 0.0
    %490 = vmatpush1.msra.mxu0 0.0
    %491 = vmatprep.subr.mxu0 0.0
    %492 = vmatpush1.msra.mxu0 0.0
    %493 = vmatprep.subr.mxu0 0.0
    %494 = vmatpush1.msra.mxu0 0.0
    %495 = vmatprep.mubr.f32.mxu0 0.0
    %496 = vmatmul.mubr.f32.gmra.mrb[0].mxu0 %v429
    %v497 = vpop.f32.mrb[0].mxu0
    %v498 = vadd.f32 0.0, %v497
    %v499 = vpop.f32.mrb[0].mxu0
    %500 = vdwg.mxu0
    %502 = vrot.lane.b32.xlu0 %v498, 8
    %v503 = vpop.permute.xlu0 %502
    %vm505 = vcmask 130112
    %506 = vst.msk [vmem:[#allocation2] sm:$0xff] %vm505, %v503
    %507 = vrot.lane.b32.xlu0 %v162, 112
    %v508 = vpop.permute.xlu0 %507
    %509 = vrot.lane.b32.xlu0 %v162, 80
    %v510 = vpop.permute.xlu0 %509
    %v511 = vsel %vm173, %v508, 0
    %v513 = vsel %vm173, %v510, 0
    %515 = vmatprep.subr.mxu0 0.0
    %516 = vmatpush1.xpose.msra.mxu0 %v513
    %517 = vmatprep.subr.mxu0 0.0
    %518 = vmatpush1.xpose.msra.mxu0 0.0
    %519 = vmatprep.subr.mxu0 0.0
    %520 = vmatpush1.xpose.msra.mxu0 0.0
    %521 = vmatprep.subr.mxu0 0.0
    %522 = vmatpush1.xpose.msra.mxu0 0.0
    %523 = vmatprep.subr.mxu0 0.0
    %524 = vmatpush1.xpose.msra.mxu0 0.0
    %525 = vmatprep.subr.mxu0 0.0
    %526 = vmatpush1.xpose.msra.mxu0 0.0
    %527 = vmatprep.subr.mxu0 0.0
    %528 = vmatpush1.xpose.msra.mxu0 0.0
    %529 = vmatprep.subr.mxu0 0.0
    %530 = vmatpush1.xpose.msra.mxu0 0.0
    %531 = vmatprep.subr.mxu0 0.0
    %532 = vmatpush1.xpose.msra.mxu0 0.0
    %533 = vmatprep.subr.mxu0 0.0
    %534 = vmatpush1.xpose.msra.mxu0 0.0
    %535 = vmatprep.subr.mxu0 0.0
    %536 = vmatpush1.xpose.msra.mxu0 0.0
    %537 = vmatprep.subr.mxu0 0.0
    %538 = vmatpush1.xpose.msra.mxu0 0.0
    %539 = vmatprep.subr.mxu0 0.0
    %540 = vmatpush1.xpose.msra.mxu0 0.0
    %541 = vmatprep.subr.mxu0 0.0
    %542 = vmatpush1.xpose.msra.mxu0 0.0
    %543 = vmatprep.subr.mxu0 0.0
    %544 = vmatpush1.xpose.msra.mxu0 0.0
    %545 = vmatprep.subr.mxu0 0.0
    %546 = vmatpush1.xpose.msra.mxu0 0.0
    %547 = vmatprep.subr.mxu0 0.0
    %548 = vmatpush1.xpose.msra.mxu0 0.0
    %549 = vmatprep.subr.mxu0 0.0
    %550 = vmatpush1.xpose.msra.mxu0 0.0
    %551 = vmatprep.subr.mxu0 0.0
    %552 = vmatpush1.xpose.msra.mxu0 0.0
    %553 = vmatprep.subr.mxu0 0.0
    %554 = vmatpush1.xpose.msra.mxu0 0.0
    %555 = vmatprep.subr.mxu0 0.0
    %556 = vmatpush1.xpose.msra.mxu0 0.0
    %557 = vmatprep.subr.mxu0 0.0
    %558 = vmatpush1.xpose.msra.mxu0 0.0
    %559 = vmatprep.subr.mxu0 0.0
    %560 = vmatpush1.xpose.msra.mxu0 0.0
    %561 = vmatprep.subr.mxu0 0.0
    %562 = vmatpush1.xpose.msra.mxu0 0.0
    %563 = vmatprep.subr.mxu0 0.0
    %564 = vmatpush1.xpose.msra.mxu0 0.0
    %565 = vmatprep.subr.mxu0 0.0
    %566 = vmatpush1.xpose.msra.mxu0 0.0
    %567 = vmatprep.subr.mxu0 0.0
    %568 = vmatpush1.xpose.msra.mxu0 0.0
    %569 = vmatprep.subr.mxu0 0.0
    %570 = vmatpush1.xpose.msra.mxu0 0.0
    %571 = vmatprep.subr.mxu0 0.0
    %572 = vmatpush1.xpose.msra.mxu0 0.0
    %573 = vmatprep.subr.mxu0 0.0
    %574 = vmatpush1.xpose.msra.mxu0 0.0
    %575 = vmatprep.subr.mxu0 0.0
    %576 = vmatpush1.xpose.msra.mxu0 0.0
    %577 = vmatprep.subr.mxu0 0.0
    %578 = vmatpush1.xpose.msra.mxu0 0.0
    %579 = vmatprep.mubr.f32.mxu0 0.0
    %580 = vmatmul.mubr.f32.gmra.mrb[0].mxu0 %v511
    %v581 = vpop.f32.mrb[0].mxu0
    %v582 = vadd.f32 0.0, %v581
    %v583 = vpop.f32.mrb[0].mxu0
    %584 = vdwg.mxu0
    %v585 = vsel %vm173, %v582, -inf
    %586 = vmax.xlane.f32.xlu0 %v585
    %v587 = vpop.xlane.xlu0 %586
    %v588 = vsub.f32 %v582, %v587
    %v589 = vmul.f32 %v588, 1.442695
    %v590 = vpow.pop %v589
    %v591 = vsel %vm173, %v590, 0.0
    %592 = vadd.xlane.f32.xlu0 %v591
    %v593 = vpop.xlane.xlu0 %592
    %v594 = vrcp.pop %v593
    %v595 = vmul.f32 %v590, %v594
    %596 = vrot.lane.b32.xlu0 %v162, 48
    %v597 = vpop.permute.xlu0 %596
    %v600 = vsel %vm173, %v595, 0
    %602 = vmatprep.subr.mxu0 0.0
    %603 = vmatpush1.msra.mxu0 %v597
    %604 = vmatprep.subr.mxu0 0.0
    %605 = vmatpush1.msra.mxu0 0.0
    %606 = vmatprep.subr.mxu0 0.0
    %607 = vmatpush1.msra.mxu0 0.0
    %608 = vmatprep.subr.mxu0 0.0
    %609 = vmatpush1.msra.mxu0 0.0
    %610 = vmatprep.subr.mxu0 0.0
    %611 = vmatpush1.msra.mxu0 0.0
    %612 = vmatprep.subr.mxu0 0.0
    %613 = vmatpush1.msra.mxu0 0.0
    %614 = vmatprep.subr.mxu0 0.0
    %615 = vmatpush1.msra.mxu0 0.0
    %616 = vmatprep.subr.mxu0 0.0
    %617 = vmatpush1.msra.mxu0 0.0
    %618 = vmatprep.subr.mxu0 0.0
    %619 = vmatpush1.msra.mxu0 0.0
    %620 = vmatprep.subr.mxu0 0.0
    %621 = vmatpush1.msra.mxu0 0.0
    %622 = vmatprep.subr.mxu0 0.0
    %623 = vmatpush1.msra.mxu0 0.0
    %624 = vmatprep.subr.mxu0 0.0
    %625 = vmatpush1.msra.mxu0 0.0
    %626 = vmatprep.subr.mxu0 0.0
    %627 = vmatpush1.msra.mxu0 0.0
    %628 = vmatprep.subr.mxu0 0.0
    %629 = vmatpush1.msra.mxu0 0.0
    %630 = vmatprep.subr.mxu0 0.0
    %631 = vmatpush1.msra.mxu0 0.0
    %632 = vmatprep.subr.mxu0 0.0
    %633 = vmatpush1.msra.mxu0 0.0
    %634 = vmatprep.subr.mxu0 0.0
    %635 = vmatpush1.msra.mxu0 0.0
    %636 = vmatprep.subr.mxu0 0.0
    %637 = vmatpush1.msra.mxu0 0.0
    %638 = vmatprep.subr.mxu0 0.0
    %639 = vmatpush1.msra.mxu0 0.0
    %640 = vmatprep.subr.mxu0 0.0
    %641 = vmatpush1.msra.mxu0 0.0
    %642 = vmatprep.subr.mxu0 0.0
    %643 = vmatpush1.msra.mxu0 0.0
    %644 = vmatprep.subr.mxu0 0.0
    %645 = vmatpush1.msra.mxu0 0.0
    %646 = vmatprep.subr.mxu0 0.0
    %647 = vmatpush1.msra.mxu0 0.0
    %648 = vmatprep.subr.mxu0 0.0
    %649 = vmatpush1.msra.mxu0 0.0
    %650 = vmatprep.subr.mxu0 0.0
    %651 = vmatpush1.msra.mxu0 0.0
    %652 = vmatprep.subr.mxu0 0.0
    %653 = vmatpush1.msra.mxu0 0.0
    %654 = vmatprep.subr.mxu0 0.0
    %655 = vmatpush1.msra.mxu0 0.0
    %656 = vmatprep.subr.mxu0 0.0
    %657 = vmatpush1.msra.mxu0 0.0
    %658 = vmatprep.subr.mxu0 0.0
    %659 = vmatpush1.msra.mxu0 0.0
    %660 = vmatprep.subr.mxu0 0.0
    %661 = vmatpush1.msra.mxu0 0.0
    %662 = vmatprep.subr.mxu0 0.0
    %663 = vmatpush1.msra.mxu0 0.0
    %664 = vmatprep.subr.mxu0 0.0
    %665 = vmatpush1.msra.mxu0 0.0
    %666 = vmatprep.mubr.f32.mxu0 0.0
    %667 = vmatmul.mubr.f32.gmra.mrb[0].mxu0 %v600
    %v668 = vpop.f32.mrb[0].mxu0
    %v669 = vadd.f32 0.0, %v668
    %v670 = vpop.f32.mrb[0].mxu0
    %671 = vdwg.mxu0
    %673 = vrot.lane.b32.xlu0 %v669, 16
    %v674 = vpop.permute.xlu0 %673
    %vm676 = vcmask 195712
    %677 = vst.msk [vmem:[#allocation2] sm:$0xff] %vm676, %v674
    %678 = vrot.lane.b32.xlu0 %v162, 104
    %v679 = vpop.permute.xlu0 %678
    %680 = vrot.lane.b32.xlu0 %v162, 72
    %v681 = vpop.permute.xlu0 %680
    %v682 = vsel %vm173, %v679, 0
    %v684 = vsel %vm173, %v681, 0
    %686 = vmatprep.subr.mxu0 0.0
    %687 = vmatpush1.xpose.msra.mxu0 %v684
    %688 = vmatprep.subr.mxu0 0.0
    %689 = vmatpush1.xpose.msra.mxu0 0.0
    %690 = vmatprep.subr.mxu0 0.0
    %691 = vmatpush1.xpose.msra.mxu0 0.0
    %692 = vmatprep.subr.mxu0 0.0
    %693 = vmatpush1.xpose.msra.mxu0 0.0
    %694 = vmatprep.subr.mxu0 0.0
    %695 = vmatpush1.xpose.msra.mxu0 0.0
    %696 = vmatprep.subr.mxu0 0.0
    %697 = vmatpush1.xpose.msra.mxu0 0.0
    %698 = vmatprep.subr.mxu0 0.0
    %699 = vmatpush1.xpose.msra.mxu0 0.0
    %700 = vmatprep.subr.mxu0 0.0
    %701 = vmatpush1.xpose.msra.mxu0 0.0
    %702 = vmatprep.subr.mxu0 0.0
    %703 = vmatpush1.xpose.msra.mxu0 0.0
    %704 = vmatprep.subr.mxu0 0.0
    %705 = vmatpush1.xpose.msra.mxu0 0.0
    %706 = vmatprep.subr.mxu0 0.0
    %707 = vmatpush1.xpose.msra.mxu0 0.0
    %708 = vmatprep.subr.mxu0 0.0
    %709 = vmatpush1.xpose.msra.mxu0 0.0
    %710 = vmatprep.subr.mxu0 0.0
    %711 = vmatpush1.xpose.msra.mxu0 0.0
    %712 = vmatprep.subr.mxu0 0.0
    %713 = vmatpush1.xpose.msra.mxu0 0.0
    %714 = vmatprep.subr.mxu0 0.0
    %715 = vmatpush1.xpose.msra.mxu0 0.0
    %716 = vmatprep.subr.mxu0 0.0
    %717 = vmatpush1.xpose.msra.mxu0 0.0
    %718 = vmatprep.subr.mxu0 0.0
    %719 = vmatpush1.xpose.msra.mxu0 0.0
    %720 = vmatprep.subr.mxu0 0.0
    %721 = vmatpush1.xpose.msra.mxu0 0.0
    %722 = vmatprep.subr.mxu0 0.0
    %723 = vmatpush1.xpose.msra.mxu0 0.0
    %724 = vmatprep.subr.mxu0 0.0
    %725 = vmatpush1.xpose.msra.mxu0 0.0
    %726 = vmatprep.subr.mxu0 0.0
    %727 = vmatpush1.xpose.msra.mxu0 0.0
    %728 = vmatprep.subr.mxu0 0.0
    %729 = vmatpush1.xpose.msra.mxu0 0.0
    %730 = vmatprep.subr.mxu0 0.0
    %731 = vmatpush1.xpose.msra.mxu0 0.0
    %732 = vmatprep.subr.mxu0 0.0
    %733 = vmatpush1.xpose.msra.mxu0 0.0
    %734 = vmatprep.subr.mxu0 0.0
    %735 = vmatpush1.xpose.msra.mxu0 0.0
    %736 = vmatprep.subr.mxu0 0.0
    %737 = vmatpush1.xpose.msra.mxu0 0.0
    %738 = vmatprep.subr.mxu0 0.0
    %739 = vmatpush1.xpose.msra.mxu0 0.0
    %740 = vmatprep.subr.mxu0 0.0
    %741 = vmatpush1.xpose.msra.mxu0 0.0
    %742 = vmatprep.subr.mxu0 0.0
    %743 = vmatpush1.xpose.msra.mxu0 0.0
    %744 = vmatprep.subr.mxu0 0.0
    %745 = vmatpush1.xpose.msra.mxu0 0.0
    %746 = vmatprep.subr.mxu0 0.0
    %747 = vmatpush1.xpose.msra.mxu0 0.0
    %748 = vmatprep.subr.mxu0 0.0
    %749 = vmatpush1.xpose.msra.mxu0 0.0
    %750 = vmatprep.mubr.f32.mxu0 0.0
    %751 = vmatmul.mubr.f32.gmra.mrb[0].mxu0 %v682
    %v752 = vpop.f32.mrb[0].mxu0
    %v753 = vadd.f32 0.0, %v752
    %v754 = vpop.f32.mrb[0].mxu0
    %755 = vdwg.mxu0
    %v756 = vsel %vm173, %v753, -inf
    %757 = vmax.xlane.f32.xlu0 %v756
    %v758 = vpop.xlane.xlu0 %757
    %v759 = vsub.f32 %v753, %v758
    %v760 = vmul.f32 %v759, 1.442695
    %v761 = vpow.pop %v760
    %v762 = vsel %vm173, %v761, 0.0
    %763 = vadd.xlane.f32.xlu0 %v762
    %v764 = vpop.xlane.xlu0 %763
    %v765 = vrcp.pop %v764
    %v766 = vmul.f32 %v761, %v765
    %767 = vrot.lane.b32.xlu0 %v162, 40
    %v768 = vpop.permute.xlu0 %767
    %v771 = vsel %vm173, %v766, 0
    %773 = vmatprep.subr.mxu0 0.0
    %774 = vmatpush1.msra.mxu0 %v768
    %775 = vmatprep.subr.mxu0 0.0
    %776 = vmatpush1.msra.mxu0 0.0
    %777 = vmatprep.subr.mxu0 0.0
    %778 = vmatpush1.msra.mxu0 0.0
    %779 = vmatprep.subr.mxu0 0.0
    %780 = vmatpush1.msra.mxu0 0.0
    %781 = vmatprep.subr.mxu0 0.0
    %782 = vmatpush1.msra.mxu0 0.0
    %783 = vmatprep.subr.mxu0 0.0
    %784 = vmatpush1.msra.mxu0 0.0
    %785 = vmatprep.subr.mxu0 0.0
    %786 = vmatpush1.msra.mxu0 0.0
    %787 = vmatprep.subr.mxu0 0.0
    %788 = vmatpush1.msra.mxu0 0.0
    %789 = vmatprep.subr.mxu0 0.0
    %790 = vmatpush1.msra.mxu0 0.0
    %791 = vmatprep.subr.mxu0 0.0
    %792 = vmatpush1.msra.mxu0 0.0
    %793 = vmatprep.subr.mxu0 0.0
    %794 = vmatpush1.msra.mxu0 0.0
    %795 = vmatprep.subr.mxu0 0.0
    %796 = vmatpush1.msra.mxu0 0.0
    %797 = vmatprep.subr.mxu0 0.0
    %798 = vmatpush1.msra.mxu0 0.0
    %799 = vmatprep.subr.mxu0 0.0
    %800 = vmatpush1.msra.mxu0 0.0
    %801 = vmatprep.subr.mxu0 0.0
    %802 = vmatpush1.msra.mxu0 0.0
    %803 = vmatprep.subr.mxu0 0.0
    %804 = vmatpush1.msra.mxu0 0.0
    %805 = vmatprep.subr.mxu0 0.0
    %806 = vmatpush1.msra.mxu0 0.0
    %807 = vmatprep.subr.mxu0 0.0
    %808 = vmatpush1.msra.mxu0 0.0
    %809 = vmatprep.subr.mxu0 0.0
    %810 = vmatpush1.msra.mxu0 0.0
    %811 = vmatprep.subr.mxu0 0.0
    %812 = vmatpush1.msra.mxu0 0.0
    %813 = vmatprep.subr.mxu0 0.0
    %814 = vmatpush1.msra.mxu0 0.0
    %815 = vmatprep.subr.mxu0 0.0
    %816 = vmatpush1.msra.mxu0 0.0
    %817 = vmatprep.subr.mxu0 0.0
    %818 = vmatpush1.msra.mxu0 0.0
    %819 = vmatprep.subr.mxu0 0.0
    %820 = vmatpush1.msra.mxu0 0.0
    %821 = vmatprep.subr.mxu0 0.0
    %822 = vmatpush1.msra.mxu0 0.0
    %823 = vmatprep.subr.mxu0 0.0
    %824 = vmatpush1.msra.mxu0 0.0
    %825 = vmatprep.subr.mxu0 0.0
    %826 = vmatpush1.msra.mxu0 0.0
    %827 = vmatprep.subr.mxu0 0.0
    %828 = vmatpush1.msra.mxu0 0.0
    %829 = vmatprep.subr.mxu0 0.0
    %830 = vmatpush1.msra.mxu0 0.0
    %831 = vmatprep.subr.mxu0 0.0
    %832 = vmatpush1.msra.mxu0 0.0
    %833 = vmatprep.subr.mxu0 0.0
    %834 = vmatpush1.msra.mxu0 0.0
    %835 = vmatprep.subr.mxu0 0.0
    %836 = vmatpush1.msra.mxu0 0.0
    %837 = vmatprep.mubr.f32.mxu0 0.0
    %838 = vmatmul.mubr.f32.gmra.mrb[0].mxu0 %v771
    %v839 = vpop.f32.mrb[0].mxu0
    %v840 = vadd.f32 0.0, %v839
    %v841 = vpop.f32.mrb[0].mxu0
    %842 = vdwg.mxu0
    %844 = vrot.lane.b32.xlu0 %v840, 24
    %v845 = vpop.permute.xlu0 %844
    %vm847 = vcmask 261312
    %848 = vst.msk [vmem:[#allocation2] sm:$0xff] %vm847, %v845
    %850 = vrot.lane.b32.xlu0 %v167, 96
    %v851 = vpop.permute.xlu0 %850
    %v852 = vsel %vm173, %v167, 0
    %v854 = vsel %vm173, %v851, 0
    %856 = vmatprep.subr.mxu0 0.0
    %857 = vmatpush1.xpose.msra.mxu0 %v854
    %858 = vmatprep.subr.mxu0 0.0
    %859 = vmatpush1.xpose.msra.mxu0 0.0
    %860 = vmatprep.subr.mxu0 0.0
    %861 = vmatpush1.xpose.msra.mxu0 0.0
    %862 = vmatprep.subr.mxu0 0.0
    %863 = vmatpush1.xpose.msra.mxu0 0.0
    %864 = vmatprep.subr.mxu0 0.0
    %865 = vmatpush1.xpose.msra.mxu0 0.0
    %866 = vmatprep.subr.mxu0 0.0
    %867 = vmatpush1.xpose.msra.mxu0 0.0
    %868 = vmatprep.subr.mxu0 0.0
    %869 = vmatpush1.xpose.msra.mxu0 0.0
    %870 = vmatprep.subr.mxu0 0.0
    %871 = vmatpush1.xpose.msra.mxu0 0.0
    %872 = vmatprep.subr.mxu0 0.0
    %873 = vmatpush1.xpose.msra.mxu0 0.0
    %874 = vmatprep.subr.mxu0 0.0
    %875 = vmatpush1.xpose.msra.mxu0 0.0
    %876 = vmatprep.subr.mxu0 0.0
    %877 = vmatpush1.xpose.msra.mxu0 0.0
    %878 = vmatprep.subr.mxu0 0.0
    %879 = vmatpush1.xpose.msra.mxu0 0.0
    %880 = vmatprep.subr.mxu0 0.0
    %881 = vmatpush1.xpose.msra.mxu0 0.0
    %882 = vmatprep.subr.mxu0 0.0
    %883 = vmatpush1.xpose.msra.mxu0 0.0
    %884 = vmatprep.subr.mxu0 0.0
    %885 = vmatpush1.xpose.msra.mxu0 0.0
    %886 = vmatprep.subr.mxu0 0.0
    %887 = vmatpush1.xpose.msra.mxu0 0.0
    %888 = vmatprep.subr.mxu0 0.0
    %889 = vmatpush1.xpose.msra.mxu0 0.0
    %890 = vmatprep.subr.mxu0 0.0
    %891 = vmatpush1.xpose.msra.mxu0 0.0
    %892 = vmatprep.subr.mxu0 0.0
    %893 = vmatpush1.xpose.msra.mxu0 0.0
    %894 = vmatprep.subr.mxu0 0.0
    %895 = vmatpush1.xpose.msra.mxu0 0.0
    %896 = vmatprep.subr.mxu0 0.0
    %897 = vmatpush1.xpose.msra.mxu0 0.0
    %898 = vmatprep.subr.mxu0 0.0
    %899 = vmatpush1.xpose.msra.mxu0 0.0
    %900 = vmatprep.subr.mxu0 0.0
    %901 = vmatpush1.xpose.msra.mxu0 0.0
    %902 = vmatprep.subr.mxu0 0.0
    %903 = vmatpush1.xpose.msra.mxu0 0.0
    %904 = vmatprep.subr.mxu0 0.0
    %905 = vmatpush1.xpose.msra.mxu0 0.0
    %906 = vmatprep.subr.mxu0 0.0
    %907 = vmatpush1.xpose.msra.mxu0 0.0
    %908 = vmatprep.subr.mxu0 0.0
    %909 = vmatpush1.xpose.msra.mxu0 0.0
    %910 = vmatprep.subr.mxu0 0.0
    %911 = vmatpush1.xpose.msra.mxu0 0.0
    %912 = vmatprep.subr.mxu0 0.0
    %913 = vmatpush1.xpose.msra.mxu0 0.0
    %914 = vmatprep.subr.mxu0 0.0
    %915 = vmatpush1.xpose.msra.mxu0 0.0
    %916 = vmatprep.subr.mxu0 0.0
    %917 = vmatpush1.xpose.msra.mxu0 0.0
    %918 = vmatprep.subr.mxu0 0.0
    %919 = vmatpush1.xpose.msra.mxu0 0.0
    %920 = vmatprep.mubr.f32.mxu0 0.0
    %921 = vmatmul.mubr.f32.gmra.mrb[0].mxu0 %v852
    %v922 = vpop.f32.mrb[0].mxu0
    %v923 = vadd.f32 0.0, %v922
    %v924 = vpop.f32.mrb[0].mxu0
    %925 = vdwg.mxu0
    %v926 = vsel %vm173, %v923, -inf
    %927 = vmax.xlane.f32.xlu0 %v926
    %v928 = vpop.xlane.xlu0 %927
    %v929 = vsub.f32 %v923, %v928
    %v930 = vmul.f32 %v929, 1.442695
    %v931 = vpow.pop %v930
    %v932 = vsel %vm173, %v931, 0.0
    %933 = vadd.xlane.f32.xlu0 %v932
    %v934 = vpop.xlane.xlu0 %933
    %v935 = vrcp.pop %v934
    %v936 = vmul.f32 %v931, %v935
    %937 = vrot.lane.b32.xlu0 %v167, 64
    %v938 = vpop.permute.xlu0 %937
    %v941 = vsel %vm173, %v936, 0
    %943 = vmatprep.subr.mxu0 0.0
    %944 = vmatpush1.msra.mxu0 %v938
    %945 = vmatprep.subr.mxu0 0.0
    %946 = vmatpush1.msra.mxu0 0.0
    %947 = vmatprep.subr.mxu0 0.0
    %948 = vmatpush1.msra.mxu0 0.0
    %949 = vmatprep.subr.mxu0 0.0
    %950 = vmatpush1.msra.mxu0 0.0
    %951 = vmatprep.subr.mxu0 0.0
    %952 = vmatpush1.msra.mxu0 0.0
    %953 = vmatprep.subr.mxu0 0.0
    %954 = vmatpush1.msra.mxu0 0.0
    %955 = vmatprep.subr.mxu0 0.0
    %956 = vmatpush1.msra.mxu0 0.0
    %957 = vmatprep.subr.mxu0 0.0
    %958 = vmatpush1.msra.mxu0 0.0
    %959 = vmatprep.subr.mxu0 0.0
    %960 = vmatpush1.msra.mxu0 0.0
    %961 = vmatprep.subr.mxu0 0.0
    %962 = vmatpush1.msra.mxu0 0.0
    %963 = vmatprep.subr.mxu0 0.0
    %964 = vmatpush1.msra.mxu0 0.0
    %965 = vmatprep.subr.mxu0 0.0
    %966 = vmatpush1.msra.mxu0 0.0
    %967 = vmatprep.subr.mxu0 0.0
    %968 = vmatpush1.msra.mxu0 0.0
    %969 = vmatprep.subr.mxu0 0.0
    %970 = vmatpush1.msra.mxu0 0.0
    %971 = vmatprep.subr.mxu0 0.0
    %972 = vmatpush1.msra.mxu0 0.0
    %973 = vmatprep.subr.mxu0 0.0
    %974 = vmatpush1.msra.mxu0 0.0
    %975 = vmatprep.subr.mxu0 0.0
    %976 = vmatpush1.msra.mxu0 0.0
    %977 = vmatprep.subr.mxu0 0.0
    %978 = vmatpush1.msra.mxu0 0.0
    %979 = vmatprep.subr.mxu0 0.0
    %980 = vmatpush1.msra.mxu0 0.0
    %981 = vmatprep.subr.mxu0 0.0
    %982 = vmatpush1.msra.mxu0 0.0
    %983 = vmatprep.subr.mxu0 0.0
    %984 = vmatpush1.msra.mxu0 0.0
    %985 = vmatprep.subr.mxu0 0.0
    %986 = vmatpush1.msra.mxu0 0.0
    %987 = vmatprep.subr.mxu0 0.0
    %988 = vmatpush1.msra.mxu0 0.0
    %989 = vmatprep.subr.mxu0 0.0
    %990 = vmatpush1.msra.mxu0 0.0
    %991 = vmatprep.subr.mxu0 0.0
    %992 = vmatpush1.msra.mxu0 0.0
    %993 = vmatprep.subr.mxu0 0.0
    %994 = vmatpush1.msra.mxu0 0.0
    %995 = vmatprep.subr.mxu0 0.0
    %996 = vmatpush1.msra.mxu0 0.0
    %997 = vmatprep.subr.mxu0 0.0
    %998 = vmatpush1.msra.mxu0 0.0
    %999 = vmatprep.subr.mxu0 0.0
    %1000 = vmatpush1.msra.mxu0 0.0
    %1001 = vmatprep.subr.mxu0 0.0
    %1002 = vmatpush1.msra.mxu0 0.0
    %1003 = vmatprep.subr.mxu0 0.0
    %1004 = vmatpush1.msra.mxu0 0.0
    %1005 = vmatprep.subr.mxu0 0.0
    %1006 = vmatpush1.msra.mxu0 0.0
    %1007 = vmatprep.mubr.f32.mxu0 0.0
    %1008 = vmatmul.mubr.f32.gmra.mrb[0].mxu0 %v941
    %v1009 = vpop.f32.mrb[0].mxu0
    %v1010 = vadd.f32 0.0, %v1009
    %v1011 = vpop.f32.mrb[0].mxu0
    %1012 = vdwg.mxu0
    %1013 = vst.msk [vmem:[#allocation2 + $0x8] sm:$0xff] %vm173, %v1010
    %1014 = vrot.lane.b32.xlu0 %v167, 120
    %v1015 = vpop.permute.xlu0 %1014
    %1016 = vrot.lane.b32.xlu0 %v167, 88
    %v1017 = vpop.permute.xlu0 %1016
    %v1018 = vsel %vm173, %v1015, 0
    %v1020 = vsel %vm173, %v1017, 0
    %1022 = vmatprep.subr.mxu0 0.0
    %1023 = vmatpush1.xpose.msra.mxu0 %v1020
    %1024 = vmatprep.subr.mxu0 0.0
    %1025 = vmatpush1.xpose.msra.mxu0 0.0
    %1026 = vmatprep.subr.mxu0 0.0
    %1027 = vmatpush1.xpose.msra.mxu0 0.0
    %1028 = vmatprep.subr.mxu0 0.0
    %1029 = vmatpush1.xpose.msra.mxu0 0.0
    %1030 = vmatprep.subr.mxu0 0.0
    %1031 = vmatpush1.xpose.msra.mxu0 0.0
    %1032 = vmatprep.subr.mxu0 0.0
    %1033 = vmatpush1.xpose.msra.mxu0 0.0
    %1034 = vmatprep.subr.mxu0 0.0
    %1035 = vmatpush1.xpose.msra.mxu0 0.0
    %1036 = vmatprep.subr.mxu0 0.0
    %1037 = vmatpush1.xpose.msra.mxu0 0.0
    %1038 = vmatprep.subr.mxu0 0.0
    %1039 = vmatpush1.xpose.msra.mxu0 0.0
    %1040 = vmatprep.subr.mxu0 0.0
    %1041 = vmatpush1.xpose.msra.mxu0 0.0
    %1042 = vmatprep.subr.mxu0 0.0
    %1043 = vmatpush1.xpose.msra.mxu0 0.0
    %1044 = vmatprep.subr.mxu0 0.0
    %1045 = vmatpush1.xpose.msra.mxu0 0.0
    %1046 = vmatprep.subr.mxu0 0.0
    %1047 = vmatpush1.xpose.msra.mxu0 0.0
    %1048 = vmatprep.subr.mxu0 0.0
    %1049 = vmatpush1.xpose.msra.mxu0 0.0
    %1050 = vmatprep.subr.mxu0 0.0
    %1051 = vmatpush1.xpose.msra.mxu0 0.0
    %1052 = vmatprep.subr.mxu0 0.0
    %1053 = vmatpush1.xpose.msra.mxu0 0.0
    %1054 = vmatprep.subr.mxu0 0.0
    %1055 = vmatpush1.xpose.msra.mxu0 0.0
    %1056 = vmatprep.subr.mxu0 0.0
    %1057 = vmatpush1.xpose.msra.mxu0 0.0
    %1058 = vmatprep.subr.mxu0 0.0
    %1059 = vmatpush1.xpose.msra.mxu0 0.0
    %1060 = vmatprep.subr.mxu0 0.0
    %1061 = vmatpush1.xpose.msra.mxu0 0.0
    %1062 = vmatprep.subr.mxu0 0.0
    %1063 = vmatpush1.xpose.msra.mxu0 0.0
    %1064 = vmatprep.subr.mxu0 0.0
    %1065 = vmatpush1.xpose.msra.mxu0 0.0
    %1066 = vmatprep.subr.mxu0 0.0
    %1067 = vmatpush1.xpose.msra.mxu0 0.0
    %1068 = vmatprep.subr.mxu0 0.0
    %1069 = vmatpush1.xpose.msra.mxu0 0.0
    %1070 = vmatprep.subr.mxu0 0.0
    %1071 = vmatpush1.xpose.msra.mxu0 0.0
    %1072 = vmatprep.subr.mxu0 0.0
    %1073 = vmatpush1.xpose.msra.mxu0 0.0
    %1074 = vmatprep.subr.mxu0 0.0
    %1075 = vmatpush1.xpose.msra.mxu0 0.0
    %1076 = vmatprep.subr.mxu0 0.0
    %1077 = vmatpush1.xpose.msra.mxu0 0.0
    %1078 = vmatprep.subr.mxu0 0.0
    %1079 = vmatpush1.xpose.msra.mxu0 0.0
    %1080 = vmatprep.subr.mxu0 0.0
    %1081 = vmatpush1.xpose.msra.mxu0 0.0
    %1082 = vmatprep.subr.mxu0 0.0
    %1083 = vmatpush1.xpose.msra.mxu0 0.0
    %1084 = vmatprep.subr.mxu0 0.0
    %1085 = vmatpush1.xpose.msra.mxu0 0.0
    %1086 = vmatprep.mubr.f32.mxu0 0.0
    %1087 = vmatmul.mubr.f32.gmra.mrb[0].mxu0 %v1018
    %v1088 = vpop.f32.mrb[0].mxu0
    %v1089 = vadd.f32 0.0, %v1088
    %v1090 = vpop.f32.mrb[0].mxu0
    %1091 = vdwg.mxu0
    %v1092 = vsel %vm173, %v1089, -inf
    %1093 = vmax.xlane.f32.xlu0 %v1092
    %v1094 = vpop.xlane.xlu0 %1093
    %v1095 = vsub.f32 %v1089, %v1094
    %v1096 = vmul.f32 %v1095, 1.442695
    %v1097 = vpow.pop %v1096
    %v1098 = vsel %vm173, %v1097, 0.0
    %1099 = vadd.xlane.f32.xlu0 %v1098
    %v1100 = vpop.xlane.xlu0 %1099
    %v1101 = vrcp.pop %v1100
    %v1102 = vmul.f32 %v1097, %v1101
    %1103 = vrot.lane.b32.xlu0 %v167, 56
    %v1104 = vpop.permute.xlu0 %1103
    %v1107 = vsel %vm173, %v1102, 0
    %1109 = vmatprep.subr.mxu0 0.0
    %1110 = vmatpush1.msra.mxu0 %v1104
    %1111 = vmatprep.subr.mxu0 0.0
    %1112 = vmatpush1.msra.mxu0 0.0
    %1113 = vmatprep.subr.mxu0 0.0
    %1114 = vmatpush1.msra.mxu0 0.0
    %1115 = vmatprep.subr.mxu0 0.0
    %1116 = vmatpush1.msra.mxu0 0.0
    %1117 = vmatprep.subr.mxu0 0.0
    %1118 = vmatpush1.msra.mxu0 0.0
    %1119 = vmatprep.subr.mxu0 0.0
    %1120 = vmatpush1.msra.mxu0 0.0
    %1121 = vmatprep.subr.mxu0 0.0
    %1122 = vmatpush1.msra.mxu0 0.0
    %1123 = vmatprep.subr.mxu0 0.0
    %1124 = vmatpush1.msra.mxu0 0.0
    %1125 = vmatprep.subr.mxu0 0.0
    %1126 = vmatpush1.msra.mxu0 0.0
    %1127 = vmatprep.subr.mxu0 0.0
    %1128 = vmatpush1.msra.mxu0 0.0
    %1129 = vmatprep.subr.mxu0 0.0
    %1130 = vmatpush1.msra.mxu0 0.0
    %1131 = vmatprep.subr.mxu0 0.0
    %1132 = vmatpush1.msra.mxu0 0.0
    %1133 = vmatprep.subr.mxu0 0.0
    %1134 = vmatpush1.msra.mxu0 0.0
    %1135 = vmatprep.subr.mxu0 0.0
    %1136 = vmatpush1.msra.mxu0 0.0
    %1137 = vmatprep.subr.mxu0 0.0
    %1138 = vmatpush1.msra.mxu0 0.0
    %1139 = vmatprep.subr.mxu0 0.0
    %1140 = vmatpush1.msra.mxu0 0.0
    %1141 = vmatprep.subr.mxu0 0.0
    %1142 = vmatpush1.msra.mxu0 0.0
    %1143 = vmatprep.subr.mxu0 0.0
    %1144 = vmatpush1.msra.mxu0 0.0
    %1145 = vmatprep.subr.mxu0 0.0
    %1146 = vmatpush1.msra.mxu0 0.0
    %1147 = vmatprep.subr.mxu0 0.0
    %1148 = vmatpush1.msra.mxu0 0.0
    %1149 = vmatprep.subr.mxu0 0.0
    %1150 = vmatpush1.msra.mxu0 0.0
    %1151 = vmatprep.subr.mxu0 0.0
    %1152 = vmatpush1.msra.mxu0 0.0
    %1153 = vmatprep.subr.mxu0 0.0
    %1154 = vmatpush1.msra.mxu0 0.0
    %1155 = vmatprep.subr.mxu0 0.0
    %1156 = vmatpush1.msra.mxu0 0.0
    %1157 = vmatprep.subr.mxu0 0.0
    %1158 = vmatpush1.msra.mxu0 0.0
    %1159 = vmatprep.subr.mxu0 0.0
    %1160 = vmatpush1.msra.mxu0 0.0
    %1161 = vmatprep.subr.mxu0 0.0
    %1162 = vmatpush1.msra.mxu0 0.0
    %1163 = vmatprep.subr.mxu0 0.0
    %1164 = vmatpush1.msra.mxu0 0.0
    %1165 = vmatprep.subr.mxu0 0.0
    %1166 = vmatpush1.msra.mxu0 0.0
    %1167 = vmatprep.subr.mxu0 0.0
    %1168 = vmatpush1.msra.mxu0 0.0
    %1169 = vmatprep.subr.mxu0 0.0
    %1170 = vmatpush1.msra.mxu0 0.0
    %1171 = vmatprep.subr.mxu0 0.0
    %1172 = vmatpush1.msra.mxu0 0.0
    %1173 = vmatprep.mubr.f32.mxu0 0.0
    %1174 = vmatmul.mubr.f32.gmra.mrb[0].mxu0 %v1107
    %v1175 = vpop.f32.mrb[0].mxu0
    %v1176 = vadd.f32 0.0, %v1175
    %v1177 = vpop.f32.mrb[0].mxu0
    %1178 = vdwg.mxu0
    %1180 = vrot.lane.b32.xlu0 %v1176, 8
    %v1181 = vpop.permute.xlu0 %1180
    %1183 = vst.msk [vmem:[#allocation2 + $0x8] sm:$0xff] %vm505, %v1181
    %1184 = vrot.lane.b32.xlu0 %v167, 112
    %v1185 = vpop.permute.xlu0 %1184
    %1186 = vrot.lane.b32.xlu0 %v167, 80
    %v1187 = vpop.permute.xlu0 %1186
    %v1188 = vsel %vm173, %v1185, 0
    %v1190 = vsel %vm173, %v1187, 0
    %1192 = vmatprep.subr.mxu0 0.0
    %1193 = vmatpush1.xpose.msra.mxu0 %v1190
    %1194 = vmatprep.subr.mxu0 0.0
    %1195 = vmatpush1.xpose.msra.mxu0 0.0
    %1196 = vmatprep.subr.mxu0 0.0
    %1197 = vmatpush1.xpose.msra.mxu0 0.0
    %1198 = vmatprep.subr.mxu0 0.0
    %1199 = vmatpush1.xpose.msra.mxu0 0.0
    %1200 = vmatprep.subr.mxu0 0.0
    %1201 = vmatpush1.xpose.msra.mxu0 0.0
    %1202 = vmatprep.subr.mxu0 0.0
    %1203 = vmatpush1.xpose.msra.mxu0 0.0
    %1204 = vmatprep.subr.mxu0 0.0
    %1205 = vmatpush1.xpose.msra.mxu0 0.0
    %1206 = vmatprep.subr.mxu0 0.0
    %1207 = vmatpush1.xpose.msra.mxu0 0.0
    %1208 = vmatprep.subr.mxu0 0.0
    %1209 = vmatpush1.xpose.msra.mxu0 0.0
    %1210 = vmatprep.subr.mxu0 0.0
    %1211 = vmatpush1.xpose.msra.mxu0 0.0
    %1212 = vmatprep.subr.mxu0 0.0
    %1213 = vmatpush1.xpose.msra.mxu0 0.0
    %1214 = vmatprep.subr.mxu0 0.0
    %1215 = vmatpush1.xpose.msra.mxu0 0.0
    %1216 = vmatprep.subr.mxu0 0.0
    %1217 = vmatpush1.xpose.msra.mxu0 0.0
    %1218 = vmatprep.subr.mxu0 0.0
    %1219 = vmatpush1.xpose.msra.mxu0 0.0
    %1220 = vmatprep.subr.mxu0 0.0
    %1221 = vmatpush1.xpose.msra.mxu0 0.0
    %1222 = vmatprep.subr.mxu0 0.0
    %1223 = vmatpush1.xpose.msra.mxu0 0.0
    %1224 = vmatprep.subr.mxu0 0.0
    %1225 = vmatpush1.xpose.msra.mxu0 0.0
    %1226 = vmatprep.subr.mxu0 0.0
    %1227 = vmatpush1.xpose.msra.mxu0 0.0
    %1228 = vmatprep.subr.mxu0 0.0
    %1229 = vmatpush1.xpose.msra.mxu0 0.0
    %1230 = vmatprep.subr.mxu0 0.0
    %1231 = vmatpush1.xpose.msra.mxu0 0.0
    %1232 = vmatprep.subr.mxu0 0.0
    %1233 = vmatpush1.xpose.msra.mxu0 0.0
    %1234 = vmatprep.subr.mxu0 0.0
    %1235 = vmatpush1.xpose.msra.mxu0 0.0
    %1236 = vmatprep.subr.mxu0 0.0
    %1237 = vmatpush1.xpose.msra.mxu0 0.0
    %1238 = vmatprep.subr.mxu0 0.0
    %1239 = vmatpush1.xpose.msra.mxu0 0.0
    %1240 = vmatprep.subr.mxu0 0.0
    %1241 = vmatpush1.xpose.msra.mxu0 0.0
    %1242 = vmatprep.subr.mxu0 0.0
    %1243 = vmatpush1.xpose.msra.mxu0 0.0
    %1244 = vmatprep.subr.mxu0 0.0
    %1245 = vmatpush1.xpose.msra.mxu0 0.0
    %1246 = vmatprep.subr.mxu0 0.0
    %1247 = vmatpush1.xpose.msra.mxu0 0.0
    %1248 = vmatprep.subr.mxu0 0.0
    %1249 = vmatpush1.xpose.msra.mxu0 0.0
    %1250 = vmatprep.subr.mxu0 0.0
    %1251 = vmatpush1.xpose.msra.mxu0 0.0
    %1252 = vmatprep.subr.mxu0 0.0
    %1253 = vmatpush1.xpose.msra.mxu0 0.0
    %1254 = vmatprep.subr.mxu0 0.0
    %1255 = vmatpush1.xpose.msra.mxu0 0.0
    %1256 = vmatprep.mubr.f32.mxu0 0.0
    %1257 = vmatmul.mubr.f32.gmra.mrb[0].mxu0 %v1188
    %v1258 = vpop.f32.mrb[0].mxu0
    %v1259 = vadd.f32 0.0, %v1258
    %v1260 = vpop.f32.mrb[0].mxu0
    %1261 = vdwg.mxu0
    %v1262 = vsel %vm173, %v1259, -inf
    %1263 = vmax.xlane.f32.xlu0 %v1262
    %v1264 = vpop.xlane.xlu0 %1263
    %v1265 = vsub.f32 %v1259, %v1264
    %v1266 = vmul.f32 %v1265, 1.442695
    %v1267 = vpow.pop %v1266
    %v1268 = vsel %vm173, %v1267, 0.0
    %1269 = vadd.xlane.f32.xlu0 %v1268
    %v1270 = vpop.xlane.xlu0 %1269
    %v1271 = vrcp.pop %v1270
    %v1272 = vmul.f32 %v1267, %v1271
    %1273 = vrot.lane.b32.xlu0 %v167, 48
    %v1274 = vpop.permute.xlu0 %1273
    %v1277 = vsel %vm173, %v1272, 0
    %1279 = vmatprep.subr.mxu0 0.0
    %1280 = vmatpush1.msra.mxu0 %v1274
    %1281 = vmatprep.subr.mxu0 0.0
    %1282 = vmatpush1.msra.mxu0 0.0
    %1283 = vmatprep.subr.mxu0 0.0
    %1284 = vmatpush1.msra.mxu0 0.0
    %1285 = vmatprep.subr.mxu0 0.0
    %1286 = vmatpush1.msra.mxu0 0.0
    %1287 = vmatprep.subr.mxu0 0.0
    %1288 = vmatpush1.msra.mxu0 0.0
    %1289 = vmatprep.subr.mxu0 0.0
    %1290 = vmatpush1.msra.mxu0 0.0
    %1291 = vmatprep.subr.mxu0 0.0
    %1292 = vmatpush1.msra.mxu0 0.0
    %1293 = vmatprep.subr.mxu0 0.0
    %1294 = vmatpush1.msra.mxu0 0.0
    %1295 = vmatprep.subr.mxu0 0.0
    %1296 = vmatpush1.msra.mxu0 0.0
    %1297 = vmatprep.subr.mxu0 0.0
    %1298 = vmatpush1.msra.mxu0 0.0
    %1299 = vmatprep.subr.mxu0 0.0
    %1300 = vmatpush1.msra.mxu0 0.0
    %1301 = vmatprep.subr.mxu0 0.0
    %1302 = vmatpush1.msra.mxu0 0.0
    %1303 = vmatprep.subr.mxu0 0.0
    %1304 = vmatpush1.msra.mxu0 0.0
    %1305 = vmatprep.subr.mxu0 0.0
    %1306 = vmatpush1.msra.mxu0 0.0
    %1307 = vmatprep.subr.mxu0 0.0
    %1308 = vmatpush1.msra.mxu0 0.0
    %1309 = vmatprep.subr.mxu0 0.0
    %1310 = vmatpush1.msra.mxu0 0.0
    %1311 = vmatprep.subr.mxu0 0.0
    %1312 = vmatpush1.msra.mxu0 0.0
    %1313 = vmatprep.subr.mxu0 0.0
    %1314 = vmatpush1.msra.mxu0 0.0
    %1315 = vmatprep.subr.mxu0 0.0
    %1316 = vmatpush1.msra.mxu0 0.0
    %1317 = vmatprep.subr.mxu0 0.0
    %1318 = vmatpush1.msra.mxu0 0.0
    %1319 = vmatprep.subr.mxu0 0.0
    %1320 = vmatpush1.msra.mxu0 0.0
    %1321 = vmatprep.subr.mxu0 0.0
    %1322 = vmatpush1.msra.mxu0 0.0
    %1323 = vmatprep.subr.mxu0 0.0
    %1324 = vmatpush1.msra.mxu0 0.0
    %1325 = vmatprep.subr.mxu0 0.0
    %1326 = vmatpush1.msra.mxu0 0.0
    %1327 = vmatprep.subr.mxu0 0.0
    %1328 = vmatpush1.msra.mxu0 0.0
    %1329 = vmatprep.subr.mxu0 0.0
    %1330 = vmatpush1.msra.mxu0 0.0
    %1331 = vmatprep.subr.mxu0 0.0
    %1332 = vmatpush1.msra.mxu0 0.0
    %1333 = vmatprep.subr.mxu0 0.0
    %1334 = vmatpush1.msra.mxu0 0.0
    %1335 = vmatprep.subr.mxu0 0.0
    %1336 = vmatpush1.msra.mxu0 0.0
    %1337 = vmatprep.subr.mxu0 0.0
    %1338 = vmatpush1.msra.mxu0 0.0
    %1339 = vmatprep.subr.mxu0 0.0
    %1340 = vmatpush1.msra.mxu0 0.0
    %1341 = vmatprep.subr.mxu0 0.0
    %1342 = vmatpush1.msra.mxu0 0.0
    %1343 = vmatprep.mubr.f32.mxu0 0.0
    %1344 = vmatmul.mubr.f32.gmra.mrb[0].mxu0 %v1277
    %v1345 = vpop.f32.mrb[0].mxu0
    %v1346 = vadd.f32 0.0, %v1345
    %v1347 = vpop.f32.mrb[0].mxu0
    %1348 = vdwg.mxu0
    %1350 = vrot.lane.b32.xlu0 %v1346, 16
    %v1351 = vpop.permute.xlu0 %1350
    %1353 = vst.msk [vmem:[#allocation2 + $0x8] sm:$0xff] %vm676, %v1351
    %1354 = vrot.lane.b32.xlu0 %v167, 104
    %v1355 = vpop.permute.xlu0 %1354
    %1356 = vrot.lane.b32.xlu0 %v167, 72
    %v1357 = vpop.permute.xlu0 %1356
    %v1358 = vsel %vm173, %v1355, 0
    %v1360 = vsel %vm173, %v1357, 0
    %1362 = vmatprep.subr.mxu0 0.0
    %1363 = vmatpush1.xpose.msra.mxu0 %v1360
    %1364 = vmatprep.subr.mxu0 0.0
    %1365 = vmatpush1.xpose.msra.mxu0 0.0
    %1366 = vmatprep.subr.mxu0 0.0
    %1367 = vmatpush1.xpose.msra.mxu0 0.0
    %1368 = vmatprep.subr.mxu0 0.0
    %1369 = vmatpush1.xpose.msra.mxu0 0.0
    %1370 = vmatprep.subr.mxu0 0.0
    %1371 = vmatpush1.xpose.msra.mxu0 0.0
    %1372 = vmatprep.subr.mxu0 0.0
    %1373 = vmatpush1.xpose.msra.mxu0 0.0
    %1374 = vmatprep.subr.mxu0 0.0
    %1375 = vmatpush1.xpose.msra.mxu0 0.0
    %1376 = vmatprep.subr.mxu0 0.0
    %1377 = vmatpush1.xpose.msra.mxu0 0.0
    %1378 = vmatprep.subr.mxu0 0.0
    %1379 = vmatpush1.xpose.msra.mxu0 0.0
    %1380 = vmatprep.subr.mxu0 0.0
    %1381 = vmatpush1.xpose.msra.mxu0 0.0
    %1382 = vmatprep.subr.mxu0 0.0
    %1383 = vmatpush1.xpose.msra.mxu0 0.0
    %1384 = vmatprep.subr.mxu0 0.0
    %1385 = vmatpush1.xpose.msra.mxu0 0.0
    %1386 = vmatprep.subr.mxu0 0.0
    %1387 = vmatpush1.xpose.msra.mxu0 0.0
    %1388 = vmatprep.subr.mxu0 0.0
    %1389 = vmatpush1.xpose.msra.mxu0 0.0
    %1390 = vmatprep.subr.mxu0 0.0
    %1391 = vmatpush1.xpose.msra.mxu0 0.0
    %1392 = vmatprep.subr.mxu0 0.0
    %1393 = vmatpush1.xpose.msra.mxu0 0.0
    %1394 = vmatprep.subr.mxu0 0.0
    %1395 = vmatpush1.xpose.msra.mxu0 0.0
    %1396 = vmatprep.subr.mxu0 0.0
    %1397 = vmatpush1.xpose.msra.mxu0 0.0
    %1398 = vmatprep.subr.mxu0 0.0
    %1399 = vmatpush1.xpose.msra.mxu0 0.0
    %1400 = vmatprep.subr.mxu0 0.0
    %1401 = vmatpush1.xpose.msra.mxu0 0.0
    %1402 = vmatprep.subr.mxu0 0.0
    %1403 = vmatpush1.xpose.msra.mxu0 0.0
    %1404 = vmatprep.subr.mxu0 0.0
    %1405 = vmatpush1.xpose.msra.mxu0 0.0
    %1406 = vmatprep.subr.mxu0 0.0
    %1407 = vmatpush1.xpose.msra.mxu0 0.0
    %1408 = vmatprep.subr.mxu0 0.0
    %1409 = vmatpush1.xpose.msra.mxu0 0.0
    %1410 = vmatprep.subr.mxu0 0.0
    %1411 = vmatpush1.xpose.msra.mxu0 0.0
    %1412 = vmatprep.subr.mxu0 0.0
    %1413 = vmatpush1.xpose.msra.mxu0 0.0
    %1414 = vmatprep.subr.mxu0 0.0
    %1415 = vmatpush1.xpose.msra.mxu0 0.0
    %1416 = vmatprep.subr.mxu0 0.0
    %1417 = vmatpush1.xpose.msra.mxu0 0.0
    %1418 = vmatprep.subr.mxu0 0.0
    %1419 = vmatpush1.xpose.msra.mxu0 0.0
    %1420 = vmatprep.subr.mxu0 0.0
    %1421 = vmatpush1.xpose.msra.mxu0 0.0
    %1422 = vmatprep.subr.mxu0 0.0
    %1423 = vmatpush1.xpose.msra.mxu0 0.0
    %1424 = vmatprep.subr.mxu0 0.0
    %1425 = vmatpush1.xpose.msra.mxu0 0.0
    %1426 = vmatprep.mubr.f32.mxu0 0.0
    %1427 = vmatmul.mubr.f32.gmra.mrb[0].mxu0 %v1358
    %v1428 = vpop.f32.mrb[0].mxu0
    %v1429 = vadd.f32 0.0, %v1428
    %v1430 = vpop.f32.mrb[0].mxu0
    %1431 = vdwg.mxu0
    %v1432 = vsel %vm173, %v1429, -inf
    %1433 = vmax.xlane.f32.xlu0 %v1432
    %v1434 = vpop.xlane.xlu0 %1433
    %v1435 = vsub.f32 %v1429, %v1434
    %v1436 = vmul.f32 %v1435, 1.442695
    %v1437 = vpow.pop %v1436
    %v1438 = vsel %vm173, %v1437, 0.0
    %1439 = vadd.xlane.f32.xlu0 %v1438
    %v1440 = vpop.xlane.xlu0 %1439
    %v1441 = vrcp.pop %v1440
    %v1442 = vmul.f32 %v1437, %v1441
    %1443 = vrot.lane.b32.xlu0 %v167, 40
    %v1444 = vpop.permute.xlu0 %1443
    %v1447 = vsel %vm173, %v1442, 0
    %1449 = vmatprep.subr.mxu0 0.0
    %1450 = vmatpush1.msra.mxu0 %v1444
    %1451 = vmatprep.subr.mxu0 0.0
    %1452 = vmatpush1.msra.mxu0 0.0
    %1453 = vmatprep.subr.mxu0 0.0
    %1454 = vmatpush1.msra.mxu0 0.0
    %1455 = vmatprep.subr.mxu0 0.0
    %1456 = vmatpush1.msra.mxu0 0.0
    %1457 = vmatprep.subr.mxu0 0.0
    %1458 = vmatpush1.msra.mxu0 0.0
    %1459 = vmatprep.subr.mxu0 0.0
    %1460 = vmatpush1.msra.mxu0 0.0
    %1461 = vmatprep.subr.mxu0 0.0
    %1462 = vmatpush1.msra.mxu0 0.0
    %1463 = vmatprep.subr.mxu0 0.0
    %1464 = vmatpush1.msra.mxu0 0.0
    %1465 = vmatprep.subr.mxu0 0.0
    %1466 = vmatpush1.msra.mxu0 0.0
    %1467 = vmatprep.subr.mxu0 0.0
    %1468 = vmatpush1.msra.mxu0 0.0
    %1469 = vmatprep.subr.mxu0 0.0
    %1470 = vmatpush1.msra.mxu0 0.0
    %1471 = vmatprep.subr.mxu0 0.0
    %1472 = vmatpush1.msra.mxu0 0.0
    %1473 = vmatprep.subr.mxu0 0.0
    %1474 = vmatpush1.msra.mxu0 0.0
    %1475 = vmatprep.subr.mxu0 0.0
    %1476 = vmatpush1.msra.mxu0 0.0
    %1477 = vmatprep.subr.mxu0 0.0
    %1478 = vmatpush1.msra.mxu0 0.0
    %1479 = vmatprep.subr.mxu0 0.0
    %1480 = vmatpush1.msra.mxu0 0.0
    %1481 = vmatprep.subr.mxu0 0.0
    %1482 = vmatpush1.msra.mxu0 0.0
    %1483 = vmatprep.subr.mxu0 0.0
    %1484 = vmatpush1.msra.mxu0 0.0
    %1485 = vmatprep.subr.mxu0 0.0
    %1486 = vmatpush1.msra.mxu0 0.0
    %1487 = vmatprep.subr.mxu0 0.0
    %1488 = vmatpush1.msra.mxu0 0.0
    %1489 = vmatprep.subr.mxu0 0.0
    %1490 = vmatpush1.msra.mxu0 0.0
    %1491 = vmatprep.subr.mxu0 0.0
    %1492 = vmatpush1.msra.mxu0 0.0
    %1493 = vmatprep.subr.mxu0 0.0
    %1494 = vmatpush1.msra.mxu0 0.0
    %1495 = vmatprep.subr.mxu0 0.0
    %1496 = vmatpush1.msra.mxu0 0.0
    %1497 = vmatprep.subr.mxu0 0.0
    %1498 = vmatpush1.msra.mxu0 0.0
    %1499 = vmatprep.subr.mxu0 0.0
    %1500 = vmatpush1.msra.mxu0 0.0
    %1501 = vmatprep.subr.mxu0 0.0
    %1502 = vmatpush1.msra.mxu0 0.0
    %1503 = vmatprep.subr.mxu0 0.0
    %1504 = vmatpush1.msra.mxu0 0.0
    %1505 = vmatprep.subr.mxu0 0.0
    %1506 = vmatpush1.msra.mxu0 0.0
    %1507 = vmatprep.subr.mxu0 0.0
    %1508 = vmatpush1.msra.mxu0 0.0
    %1509 = vmatprep.subr.mxu0 0.0
    %1510 = vmatpush1.msra.mxu0 0.0
    %1511 = vmatprep.subr.mxu0 0.0
    %1512 = vmatpush1.msra.mxu0 0.0
    %1513 = vmatprep.mubr.f32.mxu0 0.0
    %1514 = vmatmul.mubr.f32.gmra.mrb[0].mxu0 %v1447
    %v1515 = vpop.f32.mrb[0].mxu0
    %v1516 = vadd.f32 0.0, %v1515
    %v1517 = vpop.f32.mrb[0].mxu0
    %1518 = vdwg.mxu0
    %1520 = vrot.lane.b32.xlu0 %v1516, 24
    %v1521 = vpop.permute.xlu0 %1520
    %1523 = vst.msk [vmem:[#allocation2 + $0x8] sm:$0xff] %vm847, %v1521
    %v1524 = vld [vmem:[#allocation2] sm:$0xff]
    %v1525 = vld [vmem:[#allocation2 + $0x8] sm:$0xff]
    %v1526 = vld [vmem:[%s4] sm:$0xff]
    %v1527 = vld [vmem:[%s4 + $0x8] sm:$0xff]
    %v1528 = vld [vmem:[%s4 + $0x10] sm:$0xff]
    %v1529 = vld [vmem:[%s4 + $0x18] sm:$0xff]
    %v1531 = vsel %vm38, %v1524, 0
    %v1534 = vsel %vm38, %v1525, 0
    %1536 = vmatprep.subr.mxu0 0.0
    %1537 = vmatpush1.msra.mxu0 %v1526
    %1538 = vmatprep.subr.mxu0 0.0
    %1539 = vmatpush1.msra.mxu0 %v1527
    %1540 = vmatprep.subr.mxu0 0.0
    %1541 = vmatpush1.msra.mxu0 %v1528
    %1542 = vmatprep.subr.mxu0 0.0
    %1543 = vmatpush1.msra.mxu0 %v1529
    %1544 = vmatprep.subr.mxu0 0.0
    %1545 = vmatpush1.msra.mxu0 0.0
    %1546 = vmatprep.subr.mxu0 0.0
    %1547 = vmatpush1.msra.mxu0 0.0
    %1548 = vmatprep.subr.mxu0 0.0
    %1549 = vmatpush1.msra.mxu0 0.0
    %1550 = vmatprep.subr.mxu0 0.0
    %1551 = vmatpush1.msra.mxu0 0.0
    %1552 = vmatprep.subr.mxu0 0.0
    %1553 = vmatpush1.msra.mxu0 0.0
    %1554 = vmatprep.subr.mxu0 0.0
    %1555 = vmatpush1.msra.mxu0 0.0
    %1556 = vmatprep.subr.mxu0 0.0
    %1557 = vmatpush1.msra.mxu0 0.0
    %1558 = vmatprep.subr.mxu0 0.0
    %1559 = vmatpush1.msra.mxu0 0.0
    %1560 = vmatprep.subr.mxu0 0.0
    %1561 = vmatpush1.msra.mxu0 0.0
    %1562 = vmatprep.subr.mxu0 0.0
    %1563 = vmatpush1.msra.mxu0 0.0
    %1564 = vmatprep.subr.mxu0 0.0
    %1565 = vmatpush1.msra.mxu0 0.0
    %1566 = vmatprep.subr.mxu0 0.0
    %1567 = vmatpush1.msra.mxu0 0.0
    %1568 = vmatprep.subr.mxu0 0.0
    %1569 = vmatpush1.msra.mxu0 0.0
    %1570 = vmatprep.subr.mxu0 0.0
    %1571 = vmatpush1.msra.mxu0 0.0
    %1572 = vmatprep.subr.mxu0 0.0
    %1573 = vmatpush1.msra.mxu0 0.0
    %1574 = vmatprep.subr.mxu0 0.0
    %1575 = vmatpush1.msra.mxu0 0.0
    %1576 = vmatprep.subr.mxu0 0.0
    %1577 = vmatpush1.msra.mxu0 0.0
    %1578 = vmatprep.subr.mxu0 0.0
    %1579 = vmatpush1.msra.mxu0 0.0
    %1580 = vmatprep.subr.mxu0 0.0
    %1581 = vmatpush1.msra.mxu0 0.0
    %1582 = vmatprep.subr.mxu0 0.0
    %1583 = vmatpush1.msra.mxu0 0.0
    %1584 = vmatprep.subr.mxu0 0.0
    %1585 = vmatpush1.msra.mxu0 0.0
    %1586 = vmatprep.subr.mxu0 0.0
    %1587 = vmatpush1.msra.mxu0 0.0
    %1588 = vmatprep.subr.mxu0 0.0
    %1589 = vmatpush1.msra.mxu0 0.0
    %1590 = vmatprep.subr.mxu0 0.0
    %1591 = vmatpush1.msra.mxu0 0.0
    %1592 = vmatprep.subr.mxu0 0.0
    %1593 = vmatpush1.msra.mxu0 0.0
    %1594 = vmatprep.subr.mxu0 0.0
    %1595 = vmatpush1.msra.mxu0 0.0
    %1596 = vmatprep.subr.mxu0 0.0
    %1597 = vmatpush1.msra.mxu0 0.0
    %1598 = vmatprep.subr.mxu0 0.0
    %1599 = vmatpush1.msra.mxu0 0.0
    %1600 = vmatprep.mubr.f32.mxu0 0.0
    %1601 = vmatmul.mubr.f32.gmra.mrb[0].mxu0 %v1531
    %v1602 = vpop.f32.mrb[0].mxu0
    %v1603 = vadd.f32 0.0, %v1602
    %v1604 = vpop.f32.mrb[0].mxu0
    %1605 = vmatprep.mubr.f32.mxu0 0.0
    %1606 = vmatmul.mubr.f32.gmra.mrb[0].mxu0 %v1534
    %v1607 = vpop.f32.mrb[0].mxu0
    %v1608 = vadd.f32 0.0, %v1607
    %v1609 = vpop.f32.mrb[0].mxu0
    %1610 = vdwg.mxu0
    %v1611 = vadd.f32 %v30, %v1603
    %v1612 = vadd.f32 %v31, %v1608
    %v1613 = vlaneseq
    %v1614 = vshrl.u32 %v1613, 7
    %v1615 = vsub.s32 0, %v1614
    %v1616 = vrot.slane %v36, %v1615
    %v1617 = vadd.f32 %v1611, %v1616
    %v1618 = vadd.f32 %v1612, %v1616
    %v1619 = vsel %vm38, %v1617, 0.0
    %1620 = vadd.xlane.f32.xlu0 %v1619
    %v1621 = vpop.xlane.xlu0 %1620
    %v1622 = vsel %vm38, %v1618, 0.0
    %1623 = vadd.xlane.f32.xlu0 %v1622
    %v1624 = vpop.xlane.xlu0 %1623
    %v1625 = vmul.f32 %v1621, %v45
    %v1626 = vmul.f32 %v1624, %v45
    %v1627 = vsub.f32 %v1617, %v1625
    %v1628 = vsub.f32 %v1618, %v1626
    %v1629 = vmul.f32 %v1627, %v1627
    %v1630 = vmul.f32 %v1628, %v1628
    %v1631 = vsel %vm38, %v1629, 0.0
    %1632 = vadd.xlane.f32.xlu0 %v1631
    %v1633 = vpop.xlane.xlu0 %1632
    %v1634 = vsel %vm38, %v1630, 0.0
    %1635 = vadd.xlane.f32.xlu0 %v1634
    %v1636 = vpop.xlane.xlu0 %1635
    %v1637 = vmul.f32 %v1633, %v45
    %v1638 = vmul.f32 %v1636, %v45
    %v1639 = vadd.f32 %v1637, 1e-05
    %v1640 = vadd.f32 %v1638, 1e-05
    %v1641 = vrsqrt.pop %v1639
    %v1642 = vrsqrt.pop %v1640
    %v1643 = vmul.f32 %v1627, %v1641
    %v1644 = vmul.f32 %v1628, %v1642
    %v1645 = vlaneseq
    %v1646 = vshrl.u32 %v1645, 7
    %v1647 = vsub.s32 0, %v1646
    %v1648 = vrot.slane %v34, %v1647
    %v1649 = vmul.f32 %v1643, %v1648
    %v1650 = vmul.f32 %v1644, %v1648
    %v1651 = vlaneseq
    %v1652 = vshrl.u32 %v1651, 7
    %v1653 = vsub.s32 0, %v1652
    %v1654 = vrot.slane %v35, %v1653
    %v1655 = vadd.f32 %v1649, %v1654
    %v1656 = vadd.f32 %v1650, %v1654
    %v1657 = vld [vmem:[%s5] sm:$0xff]
    %v1658 = vld [vmem:[%s5 + $0x8] sm:$0xff]
    %v1659 = vld [vmem:[%s5 + $0x10] sm:$0xff]
    %v1660 = vld [vmem:[%s5 + $0x18] sm:$0xff]
    %v1661 = vld [vmem:[%s6] sm:$0x1]
    %v1663 = vlaneseq
    %v1664 = vshrl.u32 %v1663, 7
    %v1665 = vsub.s32 0, %v1664
    %v1666 = vrot.slane %v1661, %v1665
    %v1669 = vsel %vm38, %v1655, 0
    %v1672 = vsel %vm38, %v1656, 0
    %1674 = vmatprep.subr.mxu0 0.0
    %1675 = vmatpush1.msra.mxu0 %v1657
    %1676 = vmatprep.subr.mxu0 0.0
    %1677 = vmatpush1.msra.mxu0 %v1658
    %1678 = vmatprep.subr.mxu0 0.0
    %1679 = vmatpush1.msra.mxu0 %v1659
    %1680 = vmatprep.subr.mxu0 0.0
    %1681 = vmatpush1.msra.mxu0 %v1660
    %1682 = vmatprep.subr.mxu0 0.0
    %1683 = vmatpush1.msra.mxu0 0.0
    %1684 = vmatprep.subr.mxu0 0.0
    %1685 = vmatpush1.msra.mxu0 0.0
    %1686 = vmatprep.subr.mxu0 0.0
    %1687 = vmatpush1.msra.mxu0 0.0
    %1688 = vmatprep.subr.mxu0 0.0
    %1689 = vmatpush1.msra.mxu0 0.0
    %1690 = vmatprep.subr.mxu0 0.0
    %1691 = vmatpush1.msra.mxu0 0.0
    %1692 = vmatprep.subr.mxu0 0.0
    %1693 = vmatpush1.msra.mxu0 0.0
    %1694 = vmatprep.subr.mxu0 0.0
    %1695 = vmatpush1.msra.mxu0 0.0
    %1696 = vmatprep.subr.mxu0 0.0
    %1697 = vmatpush1.msra.mxu0 0.0
    %1698 = vmatprep.subr.mxu0 0.0
    %1699 = vmatpush1.msra.mxu0 0.0
    %1700 = vmatprep.subr.mxu0 0.0
    %1701 = vmatpush1.msra.mxu0 0.0
    %1702 = vmatprep.subr.mxu0 0.0
    %1703 = vmatpush1.msra.mxu0 0.0
    %1704 = vmatprep.subr.mxu0 0.0
    %1705 = vmatpush1.msra.mxu0 0.0
    %1706 = vmatprep.subr.mxu0 0.0
    %1707 = vmatpush1.msra.mxu0 0.0
    %1708 = vmatprep.subr.mxu0 0.0
    %1709 = vmatpush1.msra.mxu0 0.0
    %1710 = vmatprep.subr.mxu0 0.0
    %1711 = vmatpush1.msra.mxu0 0.0
    %1712 = vmatprep.subr.mxu0 0.0
    %1713 = vmatpush1.msra.mxu0 0.0
    %1714 = vmatprep.subr.mxu0 0.0
    %1715 = vmatpush1.msra.mxu0 0.0
    %1716 = vmatprep.subr.mxu0 0.0
    %1717 = vmatpush1.msra.mxu0 0.0
    %1718 = vmatprep.subr.mxu0 0.0
    %1719 = vmatpush1.msra.mxu0 0.0
    %1720 = vmatprep.subr.mxu0 0.0
    %1721 = vmatpush1.msra.mxu0 0.0
    %1722 = vmatprep.subr.mxu0 0.0
    %1723 = vmatpush1.msra.mxu0 0.0
    %1724 = vmatprep.subr.mxu0 0.0
    %1725 = vmatpush1.msra.mxu0 0.0
    %1726 = vmatprep.subr.mxu0 0.0
    %1727 = vmatpush1.msra.mxu0 0.0
    %1728 = vmatprep.subr.mxu0 0.0
    %1729 = vmatpush1.msra.mxu0 0.0
    %1730 = vmatprep.subr.mxu0 0.0
    %1731 = vmatpush1.msra.mxu0 0.0
    %1732 = vmatprep.subr.mxu0 0.0
    %1733 = vmatpush1.msra.mxu0 0.0
    %1734 = vmatprep.subr.mxu0 0.0
    %1735 = vmatpush1.msra.mxu0 0.0
    %1736 = vmatprep.subr.mxu0 0.0
    %1737 = vmatpush1.msra.mxu0 0.0
    %1738 = vmatprep.mubr.f32.mxu0 0.0
    %1739 = vmatmul.mubr.f32.gmra.mrb[0].mxu0 %v1669
    %v1740 = vpop.f32.mrb[0].mxu0
    %v1741 = vadd.f32 %v1666, %v1740
    %v1742 = vpop.f32.mrb[0].mxu0
    %1743 = vmatprep.mubr.f32.mxu0 0.0
    %1744 = vmatmul.mubr.f32.gmra.mrb[0].mxu0 %v1672
    %v1745 = vpop.f32.mrb[0].mxu0
    %v1746 = vadd.f32 %v1666, %v1745
    %v1747 = vpop.f32.mrb[0].mxu0
    %1748 = vdwg.mxu0
    %v1749 = vmul.f32 %v1741, 0.5
    %v1750 = vmul.f32 %v1746, 0.5
    %v1751 = vmul.f32 %v1741, 0.70710677
    %v1752 = vmul.f32 %v1746, 0.70710677
    %v1753 = verf.f32.pop %v1751
    %v1754 = verf.f32.pop %v1752
    %v1755 = vadd.f32 %v1753, 1.0
    %v1756 = vadd.f32 %v1754, 1.0
    %v1757 = vmul.f32 %v1749, %v1755
    %v1758 = vmul.f32 %v1750, %v1756
    %v1759 = vld [vmem:[%s7] sm:$0xff]
    %v1760 = vld [vmem:[%s7 + $0x8] sm:$0xff]
    %v1761 = vld [vmem:[%s7 + $0x10] sm:$0xff]
    %v1762 = vld [vmem:[%s7 + $0x18] sm:$0xff]
    %v1763 = vld [vmem:[%s7 + $0x20] sm:$0xff]
    %v1764 = vld [vmem:[%s7 + $0x28] sm:$0xff]
    %v1765 = vld [vmem:[%s7 + $0x30] sm:$0xff]
    %v1766 = vld [vmem:[%s7 + $0x38] sm:$0xff]
    %v1767 = vld [vmem:[%s7 + $0x40] sm:$0xff]
    %v1768 = vld [vmem:[%s7 + $0x48] sm:$0xff]
    %v1769 = vld [vmem:[%s7 + $0x50] sm:$0xff]
    %v1770 = vld [vmem:[%s7 + $0x58] sm:$0xff]
    %v1771 = vld [vmem:[%s7 + $0x60] sm:$0xff]
    %v1772 = vld [vmem:[%s7 + $0x68] sm:$0xff]
    %v1773 = vld [vmem:[%s7 + $0x70] sm:$0xff]
    %v1774 = vld [vmem:[%s7 + $0x78] sm:$0xff]
    %v1775 = vlaneseq
    %v1776 = vshrl.u32 %v1775, 7
    %v1777 = vsub.s32 0, %v1776
    %v1778 = vrot.slane %v37, %v1777
    %1779 = vmatprep.subr.mxu0 0.0
    %1780 = vmatpush1.msra.mxu0 %v1759
    %1781 = vmatprep.subr.mxu0 0.0
    %1782 = vmatpush1.msra.mxu0 %v1760
    %1783 = vmatprep.subr.mxu0 0.0
    %1784 = vmatpush1.msra.mxu0 %v1761
    %1785 = vmatprep.subr.mxu0 0.0
    %1786 = vmatpush1.msra.mxu0 %v1762
    %1787 = vmatprep.subr.mxu0 0.0
    %1788 = vmatpush1.msra.mxu0 %v1763
    %1789 = vmatprep.subr.mxu0 0.0
    %1790 = vmatpush1.msra.mxu0 %v1764
    %1791 = vmatprep.subr.mxu0 0.0
    %1792 = vmatpush1.msra.mxu0 %v1765
    %1793 = vmatprep.subr.mxu0 0.0
    %1794 = vmatpush1.msra.mxu0 %v1766
    %1795 = vmatprep.subr.mxu0 0.0
    %1796 = vmatpush1.msra.mxu0 %v1767
    %1797 = vmatprep.subr.mxu0 0.0
    %1798 = vmatpush1.msra.mxu0 %v1768
    %1799 = vmatprep.subr.mxu0 0.0
    %1800 = vmatpush1.msra.mxu0 %v1769
    %1801 = vmatprep.subr.mxu0 0.0
    %1802 = vmatpush1.msra.mxu0 %v1770
    %1803 = vmatprep.subr.mxu0 0.0
    %1804 = vmatpush1.msra.mxu0 %v1771
    %1805 = vmatprep.subr.mxu0 0.0
    %1806 = vmatpush1.msra.mxu0 %v1772
    %1807 = vmatprep.subr.mxu0 0.0
    %1808 = vmatpush1.msra.mxu0 %v1773
    %1809 = vmatprep.subr.mxu0 0.0
    %1810 = vmatpush1.msra.mxu0 %v1774
    %1811 = vmatprep.subr.mxu0 0.0
    %1812 = vmatpush1.msra.mxu0 0.0
    %1813 = vmatprep.subr.mxu0 0.0
    %1814 = vmatpush1.msra.mxu0 0.0
    %1815 = vmatprep.subr.mxu0 0.0
    %1816 = vmatpush1.msra.mxu0 0.0
    %1817 = vmatprep.subr.mxu0 0.0
    %1818 = vmatpush1.msra.mxu0 0.0
    %1819 = vmatprep.subr.mxu0 0.0
    %1820 = vmatpush1.msra.mxu0 0.0
    %1821 = vmatprep.subr.mxu0 0.0
    %1822 = vmatpush1.msra.mxu0 0.0
    %1823 = vmatprep.subr.mxu0 0.0
    %1824 = vmatpush1.msra.mxu0 0.0
    %1825 = vmatprep.subr.mxu0 0.0
    %1826 = vmatpush1.msra.mxu0 0.0
    %1827 = vmatprep.subr.mxu0 0.0
    %1828 = vmatpush1.msra.mxu0 0.0
    %1829 = vmatprep.subr.mxu0 0.0
    %1830 = vmatpush1.msra.mxu0 0.0
    %1831 = vmatprep.subr.mxu0 0.0
    %1832 = vmatpush1.msra.mxu0 0.0
    %1833 = vmatprep.subr.mxu0 0.0
    %1834 = vmatpush1.msra.mxu0 0.0
    %1835 = vmatprep.subr.mxu0 0.0
    %1836 = vmatpush1.msra.mxu0 0.0
    %1837 = vmatprep.subr.mxu0 0.0
    %1838 = vmatpush1.msra.mxu0 0.0
    %1839 = vmatprep.subr.mxu0 0.0
    %1840 = vmatpush1.msra.mxu0 0.0
    %1841 = vmatprep.subr.mxu0 0.0
    %1842 = vmatpush1.msra.mxu0 0.0
    %1843 = vmatprep.mubr.f32.mxu0 0.0
    %1844 = vmatmul.mubr.f32.gmra.mrb[0].mxu0 %v1757
    %v1845 = vpop.f32.mrb[0].mxu0
    %v1846 = vadd.f32 %v1778, %v1845
    %v1847 = vpop.f32.mrb[0].mxu0
    %1848 = vmatprep.mubr.f32.mxu0 0.0
    %1849 = vmatmul.mubr.f32.gmra.mrb[0].mxu0 %v1758
    %v1850 = vpop.f32.mrb[0].mxu0
    %v1851 = vadd.f32 %v1778, %v1850
    %v1852 = vpop.f32.mrb[0].mxu0
    %1853 = vdwg.mxu0
    %v1854 = vadd.f32 %v1617, %v1846
    %v1855 = vadd.f32 %v1618, %v1851
    %1856 = vst.msk [vmem:[#allocation3] sm:$0xff] %vm38, %v1854
    %1857 = vst.msk [vmem:[#allocation3 + $0x8] sm:$0xff] %vm38, %v1855
    // Predicated region
    $region34: #{tpu_custom_call.1} parent=1 // pred_check
      _
    $region35: #{tpu_custom_call.1} parent=1 // pred_check_branch
      %1859 = sbr.rel (0) target = $region37
    $region36: #{tpu_custom_call.1} parent=1 // pred_region
      %s1861 = ssub.s32 256, 256
      %1862 = vsyncadd [#allocation4], %s1861
      %s1863 = sshll.u32 [#allocation3], 4
      %s1864 = int_to_ptr.vmem [resolvable:$true] %s1863
      %1869 = dma.vmem_to_hbm [thread:$0]  %s1864, 256, %s8, [#allocation4], 128, 128, 8
    $region37: #{tpu_custom_call.1} parent=1 // pred_fallthru
      _
    // Predicated region
    $region38: #{tpu_custom_call.1} parent=1 // pred_check
      _
    $region39: #{tpu_custom_call.1} parent=1 // pred_check_branch
      %1871 = sbr.rel (0) target = $region41
    $region40: #{tpu_custom_call.1} parent=1 // pred_region
      %1872 = dma.done [#allocation4], 256
    $region41: #{tpu_custom_call.1} parent=1 // pred_fallthru
      _
    %1873 = vsyncpa [#allocation4], 1

</llo_original>
